<compile_context>
chip_gen: v5e
topology: v5e:2x2
jax: 0.10.0
libtpu: 0.0.40
codegen_flags: <defaults>
</compile_context>

<pallas_src>
import functools

import jax
import jax.numpy as jnp
from jax import lax
from jax.experimental import pallas as pl
from jax.experimental.pallas import tpu as pltpu


# ------------------------------ Pallas kernel -------------------------------
def _fused_encoder_kernel(*refs, hidden_size, seq_len, num_layers):
    """All LSTM layers fused in one grid-less kernel invocation.

    Inputs (in order):
      gx0            : (T, Bp, 4H) f32   layer-0 x_t @ W_ih^T + b_ih + b_hh (time-major)
      whh[l]         : (H, 4H)     f32   W_hh^T per layer (L of them)
      wih[l>=1]      : (H, 4H)     f32   W_ih^T for layers 1..L-1
      bias[l>=1]     : (1, 4H)     f32   b_ih + b_hh for layers 1..L-1
    Outputs:
      out            : (T, Bp, H)  f32   last layer's per-step hidden (time-major)
      hn, cn         : (L, Bp, H)  f32   final states, already stacked
    Scratch:
      h_sc, c_sc     : (Bp, H)     f32   recurrent carry
      gx_sc          : (n, T, Bp, 4H)    next-layer gate preactivations (ping-pong)
    """
    H, T, L = hidden_size, seq_len, num_layers
    n_gx = min(2, max(L - 1, 0))

    pos = 0
    gx0_ref = refs[pos]; pos += 1
    whh_refs = refs[pos:pos + L]; pos += L
    wih_refs = refs[pos:pos + (L - 1)]; pos += (L - 1)
    bias_refs = refs[pos:pos + (L - 1)]; pos += (L - 1)
    out_ref, hn_ref, cn_ref = refs[pos:pos + 3]; pos += 3
    h_sc, c_sc = refs[pos:pos + 2]; pos += 2
    gx_sc = refs[pos] if n_gx else None

    # Full unroll only for short fixed T (LLO visibility); cap otherwise.
    unroll = True if T <= 16 else 8

    for layer in range(L):
        is_last = (layer == L - 1)
        whh = whh_refs[layer][...]                                  # resident across loop
        wih_next = wih_refs[layer][...] if not is_last else None    # next layer's W_ih^T
        bias_next = bias_refs[layer][...] if not is_last else None  # (1, 4H)
        cur_buf = (layer - 1) % n_gx if layer > 0 else 0
        nxt_buf = (layer % n_gx) if not is_last else 0

        h_sc[...] = jnp.zeros_like(h_sc)
        c_sc[...] = jnp.zeros_like(c_sc)

        def step(t, carry, layer=layer, is_last=is_last, whh=whh,
                 wih_next=wih_next, bias_next=bias_next,
                 cur_buf=cur_buf, nxt_buf=nxt_buf):
            h_prev = h_sc[...]
            c_prev = c_sc[...]
            gx_t = gx0_ref[t] if layer == 0 else gx_sc[cur_buf, t]
            # Only the recurrent matmul sits on the serial chain (f32 MXU).
            gates = gx_t + jnp.dot(h_prev, whh, preferred_element_type=jnp.float32)

            # Full-vreg transcendentals (2 EUP pushes), then cheap lane slices.
            sig = jax.nn.sigmoid(gates)
            th = jnp.tanh(gates)
            i_g = sig[:, 0 * H:1 * H]           # PyTorch gate order [i, f, g, o]
            f_g = sig[:, 1 * H:2 * H]
            g_g = th[:, 2 * H:3 * H]
            o_g = sig[:, 3 * H:4 * H]

            c_new = f_g * c_prev + i_g * g_g
            h_new = o_g * jnp.tanh(c_new)
            h_sc[...] = h_new
            c_sc[...] = c_new

            if is_last:
                out_ref[t] = h_new              # VMEM store; HBM writeback at kernel end
            else:
                # Hoisted next-layer input projection: depends only on h_new,
                # nothing downstream in THIS layer depends on it -> off the
                # serial chain of both layers.
                gx_sc[nxt_buf, t] = (
                    jnp.dot(h_new, wih_next, preferred_element_type=jnp.float32)
                    + bias_next)
            return carry

        lax.fori_loop(0, T, step, 0, unroll=unroll)

        # Final states written exactly once per layer, already stacked.
        hn_ref[layer] = h_sc[...]
        cn_ref[layer] = c_sc[...]


def _fused_encoder_pallas(gx0, whh_list, wih_list, bias_list, *, H, T, L, Bp):
    vmem = pl.BlockSpec(memory_space=pltpu.MemorySpace.VMEM)
    n_gx = min(2, max(L - 1, 0))

    kernel = functools.partial(_fused_encoder_kernel,
                               hidden_size=H, seq_len=T, num_layers=L)

    out_shapes = (
        jax.ShapeDtypeStruct((T, Bp, H), jnp.float32),   # lstm_out (time-major)
        jax.ShapeDtypeStruct((L, Bp, H), jnp.float32),   # h_n stacked
        jax.ShapeDtypeStruct((L, Bp, H), jnp.float32),   # c_n stacked
    )

    scratch = [pltpu.VMEM((Bp, H), jnp.float32),          # h carry
               pltpu.VMEM((Bp, H), jnp.float32)]          # c carry
    if n_gx:
        scratch.append(pltpu.VMEM((n_gx, T, Bp, 4 * H), jnp.float32))

    inputs = [gx0] + list(whh_list) + list(wih_list) + list(bias_list)

    # No grid -> kernel runs once; every operand is a whole-array VMEM block.
    return pl.pallas_call(
        kernel,
        out_shape=out_shapes,
        in_specs=[vmem] * len(inputs),
        out_specs=(vmem, vmem, vmem),
        scratch_shapes=scratch,
    )(*inputs)


# ------------------------------ wrapper --------------------------------------
def encoder_forward(x, params):
    """Equivalent of Encoder.forward: returns (lstm_out, (h_n, c_n)).

    x: (B, T, input_size) batch_first.  params: list of per-layer
    (w_ih, w_hh, b_ih, b_hh) in PyTorch layout.  All math in f32.
    """
    B, T, _ = x.shape
    L = len(params)
    H = params[0][1].shape[1]                 # w_hh: (4H, H)
    Bp = max(8, ((B + 7) // 8) * 8)           # pad batch to full sublanes

    x_p = x.astype(jnp.float32)
    if Bp != B:
        x_p = jnp.pad(x_p, ((0, Bp - B), (0, 0), (0, 0)))

    # Layer-0 input projection hoisted into a single batched matmul; einsum
    # output is already time-major, so no separate transpose pass.
    w_ih0, w_hh0, b_ih0, b_hh0 = params[0]
    gx0 = jnp.einsum('bti,ig->tbg', x_p,
                     jnp.transpose(w_ih0).astype(jnp.float32),
                     preferred_element_type=jnp.float32)
    gx0 = gx0 + (b_ih0 + b_hh0).astype(jnp.float32)

    whh_list = [jnp.transpose(p[1]).astype(jnp.float32) for p in params]       # (H, 4H)
    wih_list = [jnp.transpose(p[0]).astype(jnp.float32) for p in params[1:]]   # (H, 4H)
    bias_list = [(p[2] + p[3]).astype(jnp.float32).reshape(1, 4 * H)
                 for p in params[1:]]

    out_tm, hn, cn = _fused_encoder_pallas(gx0, whh_list, wih_list, bias_list,
                                           H=H, T=T, L=L, Bp=Bp)

    lstm_out = jnp.transpose(out_tm, (1, 0, 2))[:B]       # (B, T, H)
    return lstm_out, (hn[:, :B], cn[:, :B])               # (L, B, H) each


# --------------------------- pure-JAX reference -------------------------------
def encoder_forward_ref(x, params):
    """Textbook fp32 LSTM reference (exact PyTorch nn.LSTM semantics/order)."""
    layer_in = jnp.transpose(x, (1, 0, 2)).astype(jnp.float32)   # time-major
    h_list, c_list = [], []
    for (w_ih, w_hh, b_ih, b_hh) in params:
        T, B, _ = layer_in.shape
        H = w_hh.shape[1]

        def step(carry, x_t, w_ih=w_ih, w_hh=w_hh, b_ih=b_ih, b_hh=b_hh):
            h, c = carry
            gates = x_t @ w_ih.T + b_ih + h @ w_hh.T + b_hh
            i, f, g, o = jnp.split(gates, 4, axis=-1)
            c_new = jax.nn.sigmoid(f) * c + jax.nn.sigmoid(i) * jnp.tanh(g)
            h_new = jax.nn.sigmoid(o) * jnp.tanh(c_new)
            return (h_new, c_new), h_new

        init = (jnp.zeros((B, H), jnp.float32), jnp.zeros((B, H), jnp.float32))
        (h_n, c_n), out_tm = lax.scan(step, init, layer_in)
        layer_in = out_tm
        h_list.append(h_n)
        c_list.append(c_n)
    return (jnp.transpose(layer_in, (1, 0, 2)),
            (jnp.stack(h_list, 0), jnp.stack(c_list, 0)))


# ------------------------------ parameter init -------------------------------
def make_params(key, input_size, hidden_size, num_layers):
    """Deterministic synthetic init (orthogonal weights / normal biases,
    mirroring the nn.init calls in Encoder.__init__)."""
    params = []
    for layer in range(num_layers):
        in_sz = input_size if layer == 0 else hidden_size
        key, k1, k2, k3, k4 = jax.random.split(key, 5)
        w_ih = jax.nn.initializers.orthogonal()(
            k1, (4 * hidden_size, in_sz), jnp.float32)
        w_hh = jax.nn.initializers.orthogonal()(
            k2, (4 * hidden_size, hidden_size), jnp.float32)
        b_ih = jax.random.normal(k3, (4 * hidden_size,), jnp.float32)
        b_hh = jax.random.normal(k4, (4 * hidden_size,), jnp.float32)
        params.append((w_ih, w_hh, b_ih, b_hh))
    return params


if __name__ == "__main__":
    B, T, INPUT, HIDDEN, LAYERS = 2, 8, 4, 32, 2

    key = jax.random.PRNGKey(0)
    key, kx = jax.random.split(key)
    x = jax.random.normal(kx, (B, T, INPUT), jnp.float32)
    params = make_params(key, INPUT, HIDDEN, LAYERS)

    fwd = jax.jit(encoder_forward)
    lstm_out, (h_n, c_n) = fwd(x, params)
    jax.block_until_ready((lstm_out, h_n, c_n))

    ref_out, (ref_h, ref_c) = encoder_forward_ref(x, params)
    assert lstm_out.shape == (B, T, HIDDEN)
    assert h_n.shape == (LAYERS, B, HIDDEN) and c_n.shape == (LAYERS, B, HIDDEN)
    assert jnp.allclose(lstm_out, ref_out, atol=1e-4, rtol=1e-4)
    assert jnp.allclose(h_n, ref_h, atol=1e-4, rtol=1e-4)
    assert jnp.allclose(c_n, ref_c, atol=1e-4, rtol=1e-4)

    print("KERNEL_OK")
</pallas_src>

<mosaic_0001>
module attributes {stable_mosaic.version = 11 : i64} {
  func.func @_fused_encoder_kernel(%arg0: memref<8x8x128xf32, #tpu.memory_space<vmem>>, %arg1: memref<32x128xf32, #tpu.memory_space<vmem>>, %arg2: memref<32x128xf32, #tpu.memory_space<vmem>>, %arg3: memref<32x128xf32, #tpu.memory_space<vmem>>, %arg4: memref<1x128xf32, #tpu.memory_space<vmem>>, %arg5: memref<8x8x32xf32, #tpu.memory_space<vmem>>, %arg6: memref<2x8x32xf32, #tpu.memory_space<vmem>>, %arg7: memref<2x8x32xf32, #tpu.memory_space<vmem>>, %arg8: memref<8x32xf32, #tpu.memory_space<vmem>>, %arg9: memref<8x32xf32, #tpu.memory_space<vmem>>, %arg10: memref<1x8x8x128xf32, #tpu.memory_space<vmem>>) attributes {dimension_semantics = [], scalar_prefetch = 0 : i64, scratch_operands = 3 : i64, tpu.core_type = #tpu.core_type<tc>} {
    %c0 = arith.constant 0 : index
    %c0_0 = arith.constant 0 : index
    %0 = vector.load %arg1[%c0, %c0_0] : memref<32x128xf32, #tpu.memory_space<vmem>>, vector<32x128xf32>
    %c0_1 = arith.constant 0 : index
    %c0_2 = arith.constant 0 : index
    %1 = vector.load %arg3[%c0_1, %c0_2] : memref<32x128xf32, #tpu.memory_space<vmem>>, vector<32x128xf32>
    %c0_3 = arith.constant 0 : index
    %c0_4 = arith.constant 0 : index
    %2 = vector.load %arg4[%c0_3, %c0_4] : memref<1x128xf32, #tpu.memory_space<vmem>>, vector<1x128xf32>
    %cst = arith.constant 0.000000e+00 : f32
    %3 = vector.broadcast %cst : f32 to vector<8x32xf32>
    %c0_5 = arith.constant 0 : index
    %c0_6 = arith.constant 0 : index
    %4 = vector.load %arg8[%c0_5, %c0_6] : memref<8x32xf32, #tpu.memory_space<vmem>>, vector<8x32xf32>
    tpu.vector_store %arg8[%c0_5, %c0_6], %3 {strides = array<i32>} : memref<8x32xf32, #tpu.memory_space<vmem>>, vector<8x32xf32>,
    %cst_7 = arith.constant 0.000000e+00 : f32
    %5 = vector.broadcast %cst_7 : f32 to vector<8x32xf32>
    %c0_8 = arith.constant 0 : index
    %c0_9 = arith.constant 0 : index
    %6 = vector.load %arg9[%c0_8, %c0_9] : memref<8x32xf32, #tpu.memory_space<vmem>>, vector<8x32xf32>
    tpu.vector_store %arg9[%c0_8, %c0_9], %5 {strides = array<i32>} : memref<8x32xf32, #tpu.memory_space<vmem>>, vector<8x32xf32>,
    %c0_i32 = arith.constant 0 : i32
    %c0_10 = arith.constant 0 : index
    %c0_11 = arith.constant 0 : index
    %7 = vector.load %arg8[%c0_10, %c0_11] : memref<8x32xf32, #tpu.memory_space<vmem>>, vector<8x32xf32>
    %c0_12 = arith.constant 0 : index
    %c0_13 = arith.constant 0 : index
    %8 = vector.load %arg9[%c0_12, %c0_13] : memref<8x32xf32, #tpu.memory_space<vmem>>, vector<8x32xf32>
    %9 = arith.index_cast %c0_i32 : i32 to index
    %c0_14 = arith.constant 0 : index
    %c0_15 = arith.constant 0 : index
    %10 = vector.load %arg0[%9, %c0_14, %c0_15] : memref<8x8x128xf32, #tpu.memory_space<vmem>>, vector<1x8x128xf32>
    %11 = vector.shape_cast %10 : vector<1x8x128xf32> to vector<8x128xf32>
    %cst_16 = arith.constant dense<0.000000e+00> : vector<8x128xf32>
    %12 = tpu.matmul %7, %0, %cst_16 {dimension_numbers = #tpu.dot_dimension_numbers<[1], [0], [0], [1], [0, 0, 1, 1], [], []>} : vector<8x32xf32>, vector<32x128xf32>, vector<8x128xf32> -> vector<8x128xf32>
    %13 = arith.addf %11, %12 : vector<8x128xf32>
    %14 = arith.negf %13 : vector<8x128xf32>
    %15 = math.exp %14 : vector<8x128xf32>
    %cst_17 = arith.constant 1.000000e+00 : f32
    %16 = vector.broadcast %cst_17 : f32 to vector<8x128xf32>
    %17 = arith.addf %16, %15 : vector<8x128xf32>
    %18 = arith.divf %16, %17 : vector<8x128xf32>
    %19 = math.tanh %13 : vector<8x128xf32>
    %20 = vector.extract_strided_slice %18 {offsets = [0, 0], sizes = [8, 32], strides = [1, 1]} : vector<8x128xf32> to vector<8x32xf32>
    %21 = vector.extract_strided_slice %18 {offsets = [0, 32], sizes = [8, 32], strides = [1, 1]} : vector<8x128xf32> to vector<8x32xf32>
    %22 = vector.extract_strided_slice %19 {offsets = [0, 64], sizes = [8, 32], strides = [1, 1]} : vector<8x128xf32> to vector<8x32xf32>
    %23 = vector.extract_strided_slice %18 {offsets = [0, 96], sizes = [8, 32], strides = [1, 1]} : vector<8x128xf32> to vector<8x32xf32>
    %24 = arith.mulf %21, %8 : vector<8x32xf32>
    %25 = arith.mulf %20, %22 : vector<8x32xf32>
    %26 = arith.addf %24, %25 : vector<8x32xf32>
    %27 = math.tanh %26 : vector<8x32xf32>
    %28 = arith.mulf %23, %27 : vector<8x32xf32>
    %c0_18 = arith.constant 0 : index
    %c0_19 = arith.constant 0 : index
    %29 = vector.load %arg8[%c0_18, %c0_19] : memref<8x32xf32, #tpu.memory_space<vmem>>, vector<8x32xf32>
    tpu.vector_store %arg8[%c0_18, %c0_19], %28 {strides = array<i32>} : memref<8x32xf32, #tpu.memory_space<vmem>>, vector<8x32xf32>,
    %c0_20 = arith.constant 0 : index
    %c0_21 = arith.constant 0 : index
    %30 = vector.load %arg9[%c0_20, %c0_21] : memref<8x32xf32, #tpu.memory_space<vmem>>, vector<8x32xf32>
    tpu.vector_store %arg9[%c0_20, %c0_21], %26 {strides = array<i32>} : memref<8x32xf32, #tpu.memory_space<vmem>>, vector<8x32xf32>,
    %cst_22 = arith.constant dense<0.000000e+00> : vector<8x128xf32>
    %31 = tpu.matmul %28, %1, %cst_22 {dimension_numbers = #tpu.dot_dimension_numbers<[1], [0], [0], [1], [0, 0, 1, 1], [], []>} : vector<8x32xf32>, vector<32x128xf32>, vector<8x128xf32> -> vector<8x128xf32>
    %32 = vector.broadcast %2 : vector<1x128xf32> to vector<8x128xf32>
    %33 = arith.addf %31, %32 : vector<8x128xf32>
    %c0_23 = arith.constant 0 : index
    %34 = arith.index_cast %c0_i32 : i32 to index
    %c0_24 = arith.constant 0 : index
    %c0_25 = arith.constant 0 : index
    %35 = vector.load %arg10[%c0_23, %34, %c0_24, %c0_25] : memref<1x8x8x128xf32, #tpu.memory_space<vmem>>, vector<1x1x8x128xf32>
    %36 = vector.shape_cast %35 : vector<1x1x8x128xf32> to vector<8x128xf32>
    %37 = vector.shape_cast %33 : vector<8x128xf32> to vector<1x1x8x128xf32>
    tpu.vector_store %arg10[%c0_23, %34, %c0_24, %c0_25], %37 {strides = array<i32>} : memref<1x8x8x128xf32, #tpu.memory_space<vmem>>, vector<1x1x8x128xf32>,
    %c1_i32 = arith.constant 1 : i32
    %c0_26 = arith.constant 0 : index
    %c0_27 = arith.constant 0 : index
    %38 = vector.load %arg8[%c0_26, %c0_27] : memref<8x32xf32, #tpu.memory_space<vmem>>, vector<8x32xf32>
    %c0_28 = arith.constant 0 : index
    %c0_29 = arith.constant 0 : index
    %39 = vector.load %arg9[%c0_28, %c0_29] : memref<8x32xf32, #tpu.memory_space<vmem>>, vector<8x32xf32>
    %40 = arith.index_cast %c1_i32 : i32 to index
    %c0_30 = arith.constant 0 : index
    %c0_31 = arith.constant 0 : index
    %41 = vector.load %arg0[%40, %c0_30, %c0_31] : memref<8x8x128xf32, #tpu.memory_space<vmem>>, vector<1x8x128xf32>
    %42 = vector.shape_cast %41 : vector<1x8x128xf32> to vector<8x128xf32>
    %cst_32 = arith.constant dense<0.000000e+00> : vector<8x128xf32>
    %43 = tpu.matmul %38, %0, %cst_32 {dimension_numbers = #tpu.dot_dimension_numbers<[1], [0], [0], [1], [0, 0, 1, 1], [], []>} : vector<8x32xf32>, vector<32x128xf32>, vector<8x128xf32> -> vector<8x128xf32>
    %44 = arith.addf %42, %43 : vector<8x128xf32>
    %45 = arith.negf %44 : vector<8x128xf32>
    %46 = math.exp %45 : vector<8x128xf32>
    %cst_33 = arith.constant 1.000000e+00 : f32
    %47 = vector.broadcast %cst_33 : f32 to vector<8x128xf32>
    %48 = arith.addf %47, %46 : vector<8x128xf32>
    %49 = arith.divf %47, %48 : vector<8x128xf32>
    %50 = math.tanh %44 : vector<8x128xf32>
    %51 = vector.extract_strided_slice %49 {offsets = [0, 0], sizes = [8, 32], strides = [1, 1]} : vector<8x128xf32> to vector<8x32xf32>
    %52 = vector.extract_strided_slice %49 {offsets = [0, 32], sizes = [8, 32], strides = [1, 1]} : vector<8x128xf32> to vector<8x32xf32>
    %53 = vector.extract_strided_slice %50 {offsets = [0, 64], sizes = [8, 32], strides = [1, 1]} : vector<8x128xf32> to vector<8x32xf32>
    %54 = vector.extract_strided_slice %49 {offsets = [0, 96], sizes = [8, 32], strides = [1, 1]} : vector<8x128xf32> to vector<8x32xf32>
    %55 = arith.mulf %52, %39 : vector<8x32xf32>
    %56 = arith.mulf %51, %53 : vector<8x32xf32>
    %57 = arith.addf %55, %56 : vector<8x32xf32>
    %58 = math.tanh %57 : vector<8x32xf32>
    %59 = arith.mulf %54, %58 : vector<8x32xf32>
    %c0_34 = arith.constant 0 : index
    %c0_35 = arith.constant 0 : index
    %60 = vector.load %arg8[%c0_34, %c0_35] : memref<8x32xf32, #tpu.memory_space<vmem>>, vector<8x32xf32>
    tpu.vector_store %arg8[%c0_34, %c0_35], %59 {strides = array<i32>} : memref<8x32xf32, #tpu.memory_space<vmem>>, vector<8x32xf32>,
    %c0_36 = arith.constant 0 : index
    %c0_37 = arith.constant 0 : index
    %61 = vector.load %arg9[%c0_36, %c0_37] : memref<8x32xf32, #tpu.memory_space<vmem>>, vector<8x32xf32>
    tpu.vector_store %arg9[%c0_36, %c0_37], %57 {strides = array<i32>} : memref<8x32xf32, #tpu.memory_space<vmem>>, vector<8x32xf32>,
    %cst_38 = arith.constant dense<0.000000e+00> : vector<8x128xf32>
    %62 = tpu.matmul %59, %1, %cst_38 {dimension_numbers = #tpu.dot_dimension_numbers<[1], [0], [0], [1], [0, 0, 1, 1], [], []>} : vector<8x32xf32>, vector<32x128xf32>, vector<8x128xf32> -> vector<8x128xf32>
    %63 = vector.broadcast %2 : vector<1x128xf32> to vector<8x128xf32>
    %64 = arith.addf %62, %63 : vector<8x128xf32>
    %c0_39 = arith.constant 0 : index
    %65 = arith.index_cast %c1_i32 : i32 to index
    %c0_40 = arith.constant 0 : index
    %c0_41 = arith.constant 0 : index
    %66 = vector.load %arg10[%c0_39, %65, %c0_40, %c0_41] : memref<1x8x8x128xf32, #tpu.memory_space<vmem>>, vector<1x1x8x128xf32>
    %67 = vector.shape_cast %66 : vector<1x1x8x128xf32> to vector<8x128xf32>
    %68 = vector.shape_cast %64 : vector<8x128xf32> to vector<1x1x8x128xf32>
    tpu.vector_store %arg10[%c0_39, %65, %c0_40, %c0_41], %68 {strides = array<i32>} : memref<1x8x8x128xf32, #tpu.memory_space<vmem>>, vector<1x1x8x128xf32>,
    %c2_i32 = arith.constant 2 : i32
    %c0_42 = arith.constant 0 : index
    %c0_43 = arith.constant 0 : index
    %69 = vector.load %arg8[%c0_42, %c0_43] : memref<8x32xf32, #tpu.memory_space<vmem>>, vector<8x32xf32>
    %c0_44 = arith.constant 0 : index
    %c0_45 = arith.constant 0 : index
    %70 = vector.load %arg9[%c0_44, %c0_45] : memref<8x32xf32, #tpu.memory_space<vmem>>, vector<8x32xf32>
    %71 = arith.index_cast %c2_i32 : i32 to index
    %c0_46 = arith.constant 0 : index
    %c0_47 = arith.constant 0 : index
    %72 = vector.load %arg0[%71, %c0_46, %c0_47] : memref<8x8x128xf32, #tpu.memory_space<vmem>>, vector<1x8x128xf32>
    %73 = vector.shape_cast %72 : vector<1x8x128xf32> to vector<8x128xf32>
    %cst_48 = arith.constant dense<0.000000e+00> : vector<8x128xf32>
    %74 = tpu.matmul %69, %0, %cst_48 {dimension_numbers = #tpu.dot_dimension_numbers<[1], [0], [0], [1], [0, 0, 1, 1], [], []>} : vector<8x32xf32>, vector<32x128xf32>, vector<8x128xf32> -> vector<8x128xf32>
    %75 = arith.addf %73, %74 : vector<8x128xf32>
    %76 = arith.negf %75 : vector<8x128xf32>
    %77 = math.exp %76 : vector<8x128xf32>
    %cst_49 = arith.constant 1.000000e+00 : f32
    %78 = vector.broadcast %cst_49 : f32 to vector<8x128xf32>
    %79 = arith.addf %78, %77 : vector<8x128xf32>
    %80 = arith.divf %78, %79 : vector<8x128xf32>
    %81 = math.tanh %75 : vector<8x128xf32>
    %82 = vector.extract_strided_slice %80 {offsets = [0, 0], sizes = [8, 32], strides = [1, 1]} : vector<8x128xf32> to vector<8x32xf32>
    %83 = vector.extract_strided_slice %80 {offsets = [0, 32], sizes = [8, 32], strides = [1, 1]} : vector<8x128xf32> to vector<8x32xf32>
    %84 = vector.extract_strided_slice %81 {offsets = [0, 64], sizes = [8, 32], strides = [1, 1]} : vector<8x128xf32> to vector<8x32xf32>
    %85 = vector.extract_strided_slice %80 {offsets = [0, 96], sizes = [8, 32], strides = [1, 1]} : vector<8x128xf32> to vector<8x32xf32>
    %86 = arith.mulf %83, %70 : vector<8x32xf32>
    %87 = arith.mulf %82, %84 : vector<8x32xf32>
    %88 = arith.addf %86, %87 : vector<8x32xf32>
    %89 = math.tanh %88 : vector<8x32xf32>
    %90 = arith.mulf %85, %89 : vector<8x32xf32>
    %c0_50 = arith.constant 0 : index
    %c0_51 = arith.constant 0 : index
    %91 = vector.load %arg8[%c0_50, %c0_51] : memref<8x32xf32, #tpu.memory_space<vmem>>, vector<8x32xf32>
    tpu.vector_store %arg8[%c0_50, %c0_51], %90 {strides = array<i32>} : memref<8x32xf32, #tpu.memory_space<vmem>>, vector<8x32xf32>,
    %c0_52 = arith.constant 0 : index
    %c0_53 = arith.constant 0 : index
    %92 = vector.load %arg9[%c0_52, %c0_53] : memref<8x32xf32, #tpu.memory_space<vmem>>, vector<8x32xf32>
    tpu.vector_store %arg9[%c0_52, %c0_53], %88 {strides = array<i32>} : memref<8x32xf32, #tpu.memory_space<vmem>>, vector<8x32xf32>,
    %cst_54 = arith.constant dense<0.000000e+00> : vector<8x128xf32>
    %93 = tpu.matmul %90, %1, %cst_54 {dimension_numbers = #tpu.dot_dimension_numbers<[1], [0], [0], [1], [0, 0, 1, 1], [], []>} : vector<8x32xf32>, vector<32x128xf32>, vector<8x128xf32> -> vector<8x128xf32>
    %94 = vector.broadcast %2 : vector<1x128xf32> to vector<8x128xf32>
    %95 = arith.addf %93, %94 : vector<8x128xf32>
    %c0_55 = arith.constant 0 : index
    %96 = arith.index_cast %c2_i32 : i32 to index
    %c0_56 = arith.constant 0 : index
    %c0_57 = arith.constant 0 : index
    %97 = vector.load %arg10[%c0_55, %96, %c0_56, %c0_57] : memref<1x8x8x128xf32, #tpu.memory_space<vmem>>, vector<1x1x8x128xf32>
    %98 = vector.shape_cast %97 : vector<1x1x8x128xf32> to vector<8x128xf32>
    %99 = vector.shape_cast %95 : vector<8x128xf32> to vector<1x1x8x128xf32>
    tpu.vector_store %arg10[%c0_55, %96, %c0_56, %c0_57], %99 {strides = array<i32>} : memref<1x8x8x128xf32, #tpu.memory_space<vmem>>, vector<1x1x8x128xf32>,
    %c3_i32 = arith.constant 3 : i32
    %c0_58 = arith.constant 0 : index
    %c0_59 = arith.constant 0 : index
    %100 = vector.load %arg8[%c0_58, %c0_59] : memref<8x32xf32, #tpu.memory_space<vmem>>, vector<8x32xf32>
    %c0_60 = arith.constant 0 : index
    %c0_61 = arith.constant 0 : index
    %101 = vector.load %arg9[%c0_60, %c0_61] : memref<8x32xf32, #tpu.memory_space<vmem>>, vector<8x32xf32>
    %102 = arith.index_cast %c3_i32 : i32 to index
    %c0_62 = arith.constant 0 : index
    %c0_63 = arith.constant 0 : index
    %103 = vector.load %arg0[%102, %c0_62, %c0_63] : memref<8x8x128xf32, #tpu.memory_space<vmem>>, vector<1x8x128xf32>
    %104 = vector.shape_cast %103 : vector<1x8x128xf32> to vector<8x128xf32>
    %cst_64 = arith.constant dense<0.000000e+00> : vector<8x128xf32>
    %105 = tpu.matmul %100, %0, %cst_64 {dimension_numbers = #tpu.dot_dimension_numbers<[1], [0], [0], [1], [0, 0, 1, 1], [], []>} : vector<8x32xf32>, vector<32x128xf32>, vector<8x128xf32> -> vector<8x128xf32>
    %106 = arith.addf %104, %105 : vector<8x128xf32>
    %107 = arith.negf %106 : vector<8x128xf32>
    %108 = math.exp %107 : vector<8x128xf32>
    %cst_65 = arith.constant 1.000000e+00 : f32
    %109 = vector.broadcast %cst_65 : f32 to vector<8x128xf32>
    %110 = arith.addf %109, %108 : vector<8x128xf32>
    %111 = arith.divf %109, %110 : vector<8x128xf32>
    %112 = math.tanh %106 : vector<8x128xf32>
    %113 = vector.extract_strided_slice %111 {offsets = [0, 0], sizes = [8, 32], strides = [1, 1]} : vector<8x128xf32> to vector<8x32xf32>
    %114 = vector.extract_strided_slice %111 {offsets = [0, 32], sizes = [8, 32], strides = [1, 1]} : vector<8x128xf32> to vector<8x32xf32>
    %115 = vector.extract_strided_slice %112 {offsets = [0, 64], sizes = [8, 32], strides = [1, 1]} : vector<8x128xf32> to vector<8x32xf32>
    %116 = vector.extract_strided_slice %111 {offsets = [0, 96], sizes = [8, 32], strides = [1, 1]} : vector<8x128xf32> to vector<8x32xf32>
    %117 = arith.mulf %114, %101 : vector<8x32xf32>
    %118 = arith.mulf %113, %115 : vector<8x32xf32>
    %119 = arith.addf %117, %118 : vector<8x32xf32>
    %120 = math.tanh %119 : vector<8x32xf32>
    %121 = arith.mulf %116, %120 : vector<8x32xf32>
    %c0_66 = arith.constant 0 : index
    %c0_67 = arith.constant 0 : index
    %122 = vector.load %arg8[%c0_66, %c0_67] : memref<8x32xf32, #tpu.memory_space<vmem>>, vector<8x32xf32>
    tpu.vector_store %arg8[%c0_66, %c0_67], %121 {strides = array<i32>} : memref<8x32xf32, #tpu.memory_space<vmem>>, vector<8x32xf32>,
    %c0_68 = arith.constant 0 : index
    %c0_69 = arith.constant 0 : index
    %123 = vector.load %arg9[%c0_68, %c0_69] : memref<8x32xf32, #tpu.memory_space<vmem>>, vector<8x32xf32>
    tpu.vector_store %arg9[%c0_68, %c0_69], %119 {strides = array<i32>} : memref<8x32xf32, #tpu.memory_space<vmem>>, vector<8x32xf32>,
    %cst_70 = arith.constant dense<0.000000e+00> : vector<8x128xf32>
    %124 = tpu.matmul %121, %1, %cst_70 {dimension_numbers = #tpu.dot_dimension_numbers<[1], [0], [0], [1], [0, 0, 1, 1], [], []>} : vector<8x32xf32>, vector<32x128xf32>, vector<8x128xf32> -> vector<8x128xf32>
    %125 = vector.broadcast %2 : vector<1x128xf32> to vector<8x128xf32>
    %126 = arith.addf %124, %125 : vector<8x128xf32>
    %c0_71 = arith.constant 0 : index
    %127 = arith.index_cast %c3_i32 : i32 to index
    %c0_72 = arith.constant 0 : index
    %c0_73 = arith.constant 0 : index
    %128 = vector.load %arg10[%c0_71, %127, %c0_72, %c0_73] : memref<1x8x8x128xf32, #tpu.memory_space<vmem>>, vector<1x1x8x128xf32>
    %129 = vector.shape_cast %128 : vector<1x1x8x128xf32> to vector<8x128xf32>
    %130 = vector.shape_cast %126 : vector<8x128xf32> to vector<1x1x8x128xf32>
    tpu.vector_store %arg10[%c0_71, %127, %c0_72, %c0_73], %130 {strides = array<i32>} : memref<1x8x8x128xf32, #tpu.memory_space<vmem>>, vector<1x1x8x128xf32>,
    %c4_i32 = arith.constant 4 : i32
    %c0_74 = arith.constant 0 : index
    %c0_75 = arith.constant 0 : index
    %131 = vector.load %arg8[%c0_74, %c0_75] : memref<8x32xf32, #tpu.memory_space<vmem>>, vector<8x32xf32>
    %c0_76 = arith.constant 0 : index
    %c0_77 = arith.constant 0 : index
    %132 = vector.load %arg9[%c0_76, %c0_77] : memref<8x32xf32, #tpu.memory_space<vmem>>, vector<8x32xf32>
    %133 = arith.index_cast %c4_i32 : i32 to index
    %c0_78 = arith.constant 0 : index
    %c0_79 = arith.constant 0 : index
    %134 = vector.load %arg0[%133, %c0_78, %c0_79] : memref<8x8x128xf32, #tpu.memory_space<vmem>>, vector<1x8x128xf32>
    %135 = vector.shape_cast %134 : vector<1x8x128xf32> to vector<8x128xf32>
    %cst_80 = arith.constant dense<0.000000e+00> : vector<8x128xf32>
    %136 = tpu.matmul %131, %0, %cst_80 {dimension_numbers = #tpu.dot_dimension_numbers<[1], [0], [0], [1], [0, 0, 1, 1], [], []>} : vector<8x32xf32>, vector<32x128xf32>, vector<8x128xf32> -> vector<8x128xf32>
    %137 = arith.addf %135, %136 : vector<8x128xf32>
    %138 = arith.negf %137 : vector<8x128xf32>
    %139 = math.exp %138 : vector<8x128xf32>
    %cst_81 = arith.constant 1.000000e+00 : f32
    %140 = vector.broadcast %cst_81 : f32 to vector<8x128xf32>
    %141 = arith.addf %140, %139 : vector<8x128xf32>
    %142 = arith.divf %140, %141 : vector<8x128xf32>
    %143 = math.tanh %137 : vector<8x128xf32>
    %144 = vector.extract_strided_slice %142 {offsets = [0, 0], sizes = [8, 32], strides = [1, 1]} : vector<8x128xf32> to vector<8x32xf32>
    %145 = vector.extract_strided_slice %142 {offsets = [0, 32], sizes = [8, 32], strides = [1, 1]} : vector<8x128xf32> to vector<8x32xf32>
    %146 = vector.extract_strided_slice %143 {offsets = [0, 64], sizes = [8, 32], strides = [1, 1]} : vector<8x128xf32> to vector<8x32xf32>
    %147 = vector.extract_strided_slice %142 {offsets = [0, 96], sizes = [8, 32], strides = [1, 1]} : vector<8x128xf32> to vector<8x32xf32>
    %148 = arith.mulf %145, %132 : vector<8x32xf32>
    %149 = arith.mulf %144, %146 : vector<8x32xf32>
    %150 = arith.addf %148, %149 : vector<8x32xf32>
    %151 = math.tanh %150 : vector<8x32xf32>
    %152 = arith.mulf %147, %151 : vector<8x32xf32>
    %c0_82 = arith.constant 0 : index
    %c0_83 = arith.constant 0 : index
    %153 = vector.load %arg8[%c0_82, %c0_83] : memref<8x32xf32, #tpu.memory_space<vmem>>, vector<8x32xf32>
    tpu.vector_store %arg8[%c0_82, %c0_83], %152 {strides = array<i32>} : memref<8x32xf32, #tpu.memory_space<vmem>>, vector<8x32xf32>,
    %c0_84 = arith.constant 0 : index
    %c0_85 = arith.constant 0 : index
    %154 = vector.load %arg9[%c0_84, %c0_85] : memref<8x32xf32, #tpu.memory_space<vmem>>, vector<8x32xf32>
    tpu.vector_store %arg9[%c0_84, %c0_85], %150 {strides = array<i32>} : memref<8x32xf32, #tpu.memory_space<vmem>>, vector<8x32xf32>,
    %cst_86 = arith.constant dense<0.000000e+00> : vector<8x128xf32>
    %155 = tpu.matmul %152, %1, %cst_86 {dimension_numbers = #tpu.dot_dimension_numbers<[1], [0], [0], [1], [0, 0, 1, 1], [], []>} : vector<8x32xf32>, vector<32x128xf32>, vector<8x128xf32> -> vector<8x128xf32>
    %156 = vector.broadcast %2 : vector<1x128xf32> to vector<8x128xf32>
    %157 = arith.addf %155, %156 : vector<8x128xf32>
    %c0_87 = arith.constant 0 : index
    %158 = arith.index_cast %c4_i32 : i32 to index
    %c0_88 = arith.constant 0 : index
    %c0_89 = arith.constant 0 : index
    %159 = vector.load %arg10[%c0_87, %158, %c0_88, %c0_89] : memref<1x8x8x128xf32, #tpu.memory_space<vmem>>, vector<1x1x8x128xf32>
    %160 = vector.shape_cast %159 : vector<1x1x8x128xf32> to vector<8x128xf32>
    %161 = vector.shape_cast %157 : vector<8x128xf32> to vector<1x1x8x128xf32>
    tpu.vector_store %arg10[%c0_87, %158, %c0_88, %c0_89], %161 {strides = array<i32>} : memref<1x8x8x128xf32, #tpu.memory_space<vmem>>, vector<1x1x8x128xf32>,
    %c5_i32 = arith.constant 5 : i32
    %c0_90 = arith.constant 0 : index
    %c0_91 = arith.constant 0 : index
    %162 = vector.load %arg8[%c0_90, %c0_91] : memref<8x32xf32, #tpu.memory_space<vmem>>, vector<8x32xf32>
    %c0_92 = arith.constant 0 : index
    %c0_93 = arith.constant 0 : index
    %163 = vector.load %arg9[%c0_92, %c0_93] : memref<8x32xf32, #tpu.memory_space<vmem>>, vector<8x32xf32>
    %164 = arith.index_cast %c5_i32 : i32 to index
    %c0_94 = arith.constant 0 : index
    %c0_95 = arith.constant 0 : index
    %165 = vector.load %arg0[%164, %c0_94, %c0_95] : memref<8x8x128xf32, #tpu.memory_space<vmem>>, vector<1x8x128xf32>
    %166 = vector.shape_cast %165 : vector<1x8x128xf32> to vector<8x128xf32>
    %cst_96 = arith.constant dense<0.000000e+00> : vector<8x128xf32>
    %167 = tpu.matmul %162, %0, %cst_96 {dimension_numbers = #tpu.dot_dimension_numbers<[1], [0], [0], [1], [0, 0, 1, 1], [], []>} : vector<8x32xf32>, vector<32x128xf32>, vector<8x128xf32> -> vector<8x128xf32>
    %168 = arith.addf %166, %167 : vector<8x128xf32>
    %169 = arith.negf %168 : vector<8x128xf32>
    %170 = math.exp %169 : vector<8x128xf32>
    %cst_97 = arith.constant 1.000000e+00 : f32
    %171 = vector.broadcast %cst_97 : f32 to vector<8x128xf32>
    %172 = arith.addf %171, %170 : vector<8x128xf32>
    %173 = arith.divf %171, %172 : vector<8x128xf32>
    %174 = math.tanh %168 : vector<8x128xf32>
    %175 = vector.extract_strided_slice %173 {offsets = [0, 0], sizes = [8, 32], strides = [1, 1]} : vector<8x128xf32> to vector<8x32xf32>
    %176 = vector.extract_strided_slice %173 {offsets = [0, 32], sizes = [8, 32], strides = [1, 1]} : vector<8x128xf32> to vector<8x32xf32>
    %177 = vector.extract_strided_slice %174 {offsets = [0, 64], sizes = [8, 32], strides = [1, 1]} : vector<8x128xf32> to vector<8x32xf32>
    %178 = vector.extract_strided_slice %173 {offsets = [0, 96], sizes = [8, 32], strides = [1, 1]} : vector<8x128xf32> to vector<8x32xf32>
    %179 = arith.mulf %176, %163 : vector<8x32xf32>
    %180 = arith.mulf %175, %177 : vector<8x32xf32>
    %181 = arith.addf %179, %180 : vector<8x32xf32>
    %182 = math.tanh %181 : vector<8x32xf32>
    %183 = arith.mulf %178, %182 : vector<8x32xf32>
    %c0_98 = arith.constant 0 : index
    %c0_99 = arith.constant 0 : index
    %184 = vector.load %arg8[%c0_98, %c0_99] : memref<8x32xf32, #tpu.memory_space<vmem>>, vector<8x32xf32>
    tpu.vector_store %arg8[%c0_98, %c0_99], %183 {strides = array<i32>} : memref<8x32xf32, #tpu.memory_space<vmem>>, vector<8x32xf32>,
    %c0_100 = arith.constant 0 : index
    %c0_101 = arith.constant 0 : index
    %185 = vector.load %arg9[%c0_100, %c0_101] : memref<8x32xf32, #tpu.memory_space<vmem>>, vector<8x32xf32>
    tpu.vector_store %arg9[%c0_100, %c0_101], %181 {strides = array<i32>} : memref<8x32xf32, #tpu.memory_space<vmem>>, vector<8x32xf32>,
    %cst_102 = arith.constant dense<0.000000e+00> : vector<8x128xf32>
    %186 = tpu.matmul %183, %1, %cst_102 {dimension_numbers = #tpu.dot_dimension_numbers<[1], [0], [0], [1], [0, 0, 1, 1], [], []>} : vector<8x32xf32>, vector<32x128xf32>, vector<8x128xf32> -> vector<8x128xf32>
    %187 = vector.broadcast %2 : vector<1x128xf32> to vector<8x128xf32>
    %188 = arith.addf %186, %187 : vector<8x128xf32>
    %c0_103 = arith.constant 0 : index
    %189 = arith.index_cast %c5_i32 : i32 to index
    %c0_104 = arith.constant 0 : index
    %c0_105 = arith.constant 0 : index
    %190 = vector.load %arg10[%c0_103, %189, %c0_104, %c0_105] : memref<1x8x8x128xf32, #tpu.memory_space<vmem>>, vector<1x1x8x128xf32>
    %191 = vector.shape_cast %190 : vector<1x1x8x128xf32> to vector<8x128xf32>
    %192 = vector.shape_cast %188 : vector<8x128xf32> to vector<1x1x8x128xf32>
    tpu.vector_store %arg10[%c0_103, %189, %c0_104, %c0_105], %192 {strides = array<i32>} : memref<1x8x8x128xf32, #tpu.memory_space<vmem>>, vector<1x1x8x128xf32>,
    %c6_i32 = arith.constant 6 : i32
    %c0_106 = arith.constant 0 : index
    %c0_107 = arith.constant 0 : index
    %193 = vector.load %arg8[%c0_106, %c0_107] : memref<8x32xf32, #tpu.memory_space<vmem>>, vector<8x32xf32>
    %c0_108 = arith.constant 0 : index
    %c0_109 = arith.constant 0 : index
    %194 = vector.load %arg9[%c0_108, %c0_109] : memref<8x32xf32, #tpu.memory_space<vmem>>, vector<8x32xf32>
    %195 = arith.index_cast %c6_i32 : i32 to index
    %c0_110 = arith.constant 0 : index
    %c0_111 = arith.constant 0 : index
    %196 = vector.load %arg0[%195, %c0_110, %c0_111] : memref<8x8x128xf32, #tpu.memory_space<vmem>>, vector<1x8x128xf32>
    %197 = vector.shape_cast %196 : vector<1x8x128xf32> to vector<8x128xf32>
    %cst_112 = arith.constant dense<0.000000e+00> : vector<8x128xf32>
    %198 = tpu.matmul %193, %0, %cst_112 {dimension_numbers = #tpu.dot_dimension_numbers<[1], [0], [0], [1], [0, 0, 1, 1], [], []>} : vector<8x32xf32>, vector<32x128xf32>, vector<8x128xf32> -> vector<8x128xf32>
    %199 = arith.addf %197, %198 : vector<8x128xf32>
    %200 = arith.negf %199 : vector<8x128xf32>
    %201 = math.exp %200 : vector<8x128xf32>
    %cst_113 = arith.constant 1.000000e+00 : f32
    %202 = vector.broadcast %cst_113 : f32 to vector<8x128xf32>
    %203 = arith.addf %202, %201 : vector<8x128xf32>
    %204 = arith.divf %202, %203 : vector<8x128xf32>
    %205 = math.tanh %199 : vector<8x128xf32>
    %206 = vector.extract_strided_slice %204 {offsets = [0, 0], sizes = [8, 32], strides = [1, 1]} : vector<8x128xf32> to vector<8x32xf32>
    %207 = vector.extract_strided_slice %204 {offsets = [0, 32], sizes = [8, 32], strides = [1, 1]} : vector<8x128xf32> to vector<8x32xf32>
    %208 = vector.extract_strided_slice %205 {offsets = [0, 64], sizes = [8, 32], strides = [1, 1]} : vector<8x128xf32> to vector<8x32xf32>
    %209 = vector.extract_strided_slice %204 {offsets = [0, 96], sizes = [8, 32], strides = [1, 1]} : vector<8x128xf32> to vector<8x32xf32>
    %210 = arith.mulf %207, %194 : vector<8x32xf32>
    %211 = arith.mulf %206, %208 : vector<8x32xf32>
    %212 = arith.addf %210, %211 : vector<8x32xf32>
    %213 = math.tanh %212 : vector<8x32xf32>
    %214 = arith.mulf %209, %213 : vector<8x32xf32>
    %c0_114 = arith.constant 0 : index
    %c0_115 = arith.constant 0 : index
    %215 = vector.load %arg8[%c0_114, %c0_115] : memref<8x32xf32, #tpu.memory_space<vmem>>, vector<8x32xf32>
    tpu.vector_store %arg8[%c0_114, %c0_115], %214 {strides = array<i32>} : memref<8x32xf32, #tpu.memory_space<vmem>>, vector<8x32xf32>,
    %c0_116 = arith.constant 0 : index
    %c0_117 = arith.constant 0 : index
    %216 = vector.load %arg9[%c0_116, %c0_117] : memref<8x32xf32, #tpu.memory_space<vmem>>, vector<8x32xf32>
    tpu.vector_store %arg9[%c0_116, %c0_117], %212 {strides = array<i32>} : memref<8x32xf32, #tpu.memory_space<vmem>>, vector<8x32xf32>,
    %cst_118 = arith.constant dense<0.000000e+00> : vector<8x128xf32>
    %217 = tpu.matmul %214, %1, %cst_118 {dimension_numbers = #tpu.dot_dimension_numbers<[1], [0], [0], [1], [0, 0, 1, 1], [], []>} : vector<8x32xf32>, vector<32x128xf32>, vector<8x128xf32> -> vector<8x128xf32>
    %218 = vector.broadcast %2 : vector<1x128xf32> to vector<8x128xf32>
    %219 = arith.addf %217, %218 : vector<8x128xf32>
    %c0_119 = arith.constant 0 : index
    %220 = arith.index_cast %c6_i32 : i32 to index
    %c0_120 = arith.constant 0 : index
    %c0_121 = arith.constant 0 : index
    %221 = vector.load %arg10[%c0_119, %220, %c0_120, %c0_121] : memref<1x8x8x128xf32, #tpu.memory_space<vmem>>, vector<1x1x8x128xf32>
    %222 = vector.shape_cast %221 : vector<1x1x8x128xf32> to vector<8x128xf32>
    %223 = vector.shape_cast %219 : vector<8x128xf32> to vector<1x1x8x128xf32>
    tpu.vector_store %arg10[%c0_119, %220, %c0_120, %c0_121], %223 {strides = array<i32>} : memref<1x8x8x128xf32, #tpu.memory_space<vmem>>, vector<1x1x8x128xf32>,
    %c7_i32 = arith.constant 7 : i32
    %c0_122 = arith.constant 0 : index
    %c0_123 = arith.constant 0 : index
    %224 = vector.load %arg8[%c0_122, %c0_123] : memref<8x32xf32, #tpu.memory_space<vmem>>, vector<8x32xf32>
    %c0_124 = arith.constant 0 : index
    %c0_125 = arith.constant 0 : index
    %225 = vector.load %arg9[%c0_124, %c0_125] : memref<8x32xf32, #tpu.memory_space<vmem>>, vector<8x32xf32>
    %226 = arith.index_cast %c7_i32 : i32 to index
    %c0_126 = arith.constant 0 : index
    %c0_127 = arith.constant 0 : index
    %227 = vector.load %arg0[%226, %c0_126, %c0_127] : memref<8x8x128xf32, #tpu.memory_space<vmem>>, vector<1x8x128xf32>
    %228 = vector.shape_cast %227 : vector<1x8x128xf32> to vector<8x128xf32>
    %cst_128 = arith.constant dense<0.000000e+00> : vector<8x128xf32>
    %229 = tpu.matmul %224, %0, %cst_128 {dimension_numbers = #tpu.dot_dimension_numbers<[1], [0], [0], [1], [0, 0, 1, 1], [], []>} : vector<8x32xf32>, vector<32x128xf32>, vector<8x128xf32> -> vector<8x128xf32>
    %230 = arith.addf %228, %229 : vector<8x128xf32>
    %231 = arith.negf %230 : vector<8x128xf32>
    %232 = math.exp %231 : vector<8x128xf32>
    %cst_129 = arith.constant 1.000000e+00 : f32
    %233 = vector.broadcast %cst_129 : f32 to vector<8x128xf32>
    %234 = arith.addf %233, %232 : vector<8x128xf32>
    %235 = arith.divf %233, %234 : vector<8x128xf32>
    %236 = math.tanh %230 : vector<8x128xf32>
    %237 = vector.extract_strided_slice %235 {offsets = [0, 0], sizes = [8, 32], strides = [1, 1]} : vector<8x128xf32> to vector<8x32xf32>
    %238 = vector.extract_strided_slice %235 {offsets = [0, 32], sizes = [8, 32], strides = [1, 1]} : vector<8x128xf32> to vector<8x32xf32>
    %239 = vector.extract_strided_slice %236 {offsets = [0, 64], sizes = [8, 32], strides = [1, 1]} : vector<8x128xf32> to vector<8x32xf32>
    %240 = vector.extract_strided_slice %235 {offsets = [0, 96], sizes = [8, 32], strides = [1, 1]} : vector<8x128xf32> to vector<8x32xf32>
    %241 = arith.mulf %238, %225 : vector<8x32xf32>
    %242 = arith.mulf %237, %239 : vector<8x32xf32>
    %243 = arith.addf %241, %242 : vector<8x32xf32>
    %244 = math.tanh %243 : vector<8x32xf32>
    %245 = arith.mulf %240, %244 : vector<8x32xf32>
    %c0_130 = arith.constant 0 : index
    %c0_131 = arith.constant 0 : index
    %246 = vector.load %arg8[%c0_130, %c0_131] : memref<8x32xf32, #tpu.memory_space<vmem>>, vector<8x32xf32>
    tpu.vector_store %arg8[%c0_130, %c0_131], %245 {strides = array<i32>} : memref<8x32xf32, #tpu.memory_space<vmem>>, vector<8x32xf32>,
    %c0_132 = arith.constant 0 : index
    %c0_133 = arith.constant 0 : index
    %247 = vector.load %arg9[%c0_132, %c0_133] : memref<8x32xf32, #tpu.memory_space<vmem>>, vector<8x32xf32>
    tpu.vector_store %arg9[%c0_132, %c0_133], %243 {strides = array<i32>} : memref<8x32xf32, #tpu.memory_space<vmem>>, vector<8x32xf32>,
    %cst_134 = arith.constant dense<0.000000e+00> : vector<8x128xf32>
    %248 = tpu.matmul %245, %1, %cst_134 {dimension_numbers = #tpu.dot_dimension_numbers<[1], [0], [0], [1], [0, 0, 1, 1], [], []>} : vector<8x32xf32>, vector<32x128xf32>, vector<8x128xf32> -> vector<8x128xf32>
    %249 = vector.broadcast %2 : vector<1x128xf32> to vector<8x128xf32>
    %250 = arith.addf %248, %249 : vector<8x128xf32>
    %c0_135 = arith.constant 0 : index
    %251 = arith.index_cast %c7_i32 : i32 to index
    %c0_136 = arith.constant 0 : index
    %c0_137 = arith.constant 0 : index
    %252 = vector.load %arg10[%c0_135, %251, %c0_136, %c0_137] : memref<1x8x8x128xf32, #tpu.memory_space<vmem>>, vector<1x1x8x128xf32>
    %253 = vector.shape_cast %252 : vector<1x1x8x128xf32> to vector<8x128xf32>
    %254 = vector.shape_cast %250 : vector<8x128xf32> to vector<1x1x8x128xf32>
    tpu.vector_store %arg10[%c0_135, %251, %c0_136, %c0_137], %254 {strides = array<i32>} : memref<1x8x8x128xf32, #tpu.memory_space<vmem>>, vector<1x1x8x128xf32>,
    %c8_i32 = arith.constant 8 : i32
    %c0_138 = arith.constant 0 : index
    %c0_139 = arith.constant 0 : index
    %255 = vector.load %arg8[%c0_138, %c0_139] : memref<8x32xf32, #tpu.memory_space<vmem>>, vector<8x32xf32>
    %c0_140 = arith.constant 0 : index
    %c0_141 = arith.constant 0 : index
    %c0_142 = arith.constant 0 : index
    %256 = vector.load %arg6[%c0_140, %c0_141, %c0_142] : memref<2x8x32xf32, #tpu.memory_space<vmem>>, vector<1x8x32xf32>
    %257 = vector.shape_cast %256 : vector<1x8x32xf32> to vector<8x32xf32>
    %258 = vector.shape_cast %255 : vector<8x32xf32> to vector<1x8x32xf32>
    tpu.vector_store %arg6[%c0_140, %c0_141, %c0_142], %258 {strides = array<i32>} : memref<2x8x32xf32, #tpu.memory_space<vmem>>, vector<1x8x32xf32>,
    %c0_143 = arith.constant 0 : index
    %c0_144 = arith.constant 0 : index
    %259 = vector.load %arg9[%c0_143, %c0_144] : memref<8x32xf32, #tpu.memory_space<vmem>>, vector<8x32xf32>
    %c0_145 = arith.constant 0 : index
    %c0_146 = arith.constant 0 : index
    %c0_147 = arith.constant 0 : index
    %260 = vector.load %arg7[%c0_145, %c0_146, %c0_147] : memref<2x8x32xf32, #tpu.memory_space<vmem>>, vector<1x8x32xf32>
    %261 = vector.shape_cast %260 : vector<1x8x32xf32> to vector<8x32xf32>
    %262 = vector.shape_cast %259 : vector<8x32xf32> to vector<1x8x32xf32>
    tpu.vector_store %arg7[%c0_145, %c0_146, %c0_147], %262 {strides = array<i32>} : memref<2x8x32xf32, #tpu.memory_space<vmem>>, vector<1x8x32xf32>,
    %c0_148 = arith.constant 0 : index
    %c0_149 = arith.constant 0 : index
    %263 = vector.load %arg2[%c0_148, %c0_149] : memref<32x128xf32, #tpu.memory_space<vmem>>, vector<32x128xf32>
    %cst_150 = arith.constant 0.000000e+00 : f32
    %264 = vector.broadcast %cst_150 : f32 to vector<8x32xf32>
    %c0_151 = arith.constant 0 : index
    %c0_152 = arith.constant 0 : index
    %265 = vector.load %arg8[%c0_151, %c0_152] : memref<8x32xf32, #tpu.memory_space<vmem>>, vector<8x32xf32>
    tpu.vector_store %arg8[%c0_151, %c0_152], %264 {strides = array<i32>} : memref<8x32xf32, #tpu.memory_space<vmem>>, vector<8x32xf32>,
    %cst_153 = arith.constant 0.000000e+00 : f32
    %266 = vector.broadcast %cst_153 : f32 to vector<8x32xf32>
    %c0_154 = arith.constant 0 : index
    %c0_155 = arith.constant 0 : index
    %267 = vector.load %arg9[%c0_154, %c0_155] : memref<8x32xf32, #tpu.memory_space<vmem>>, vector<8x32xf32>
    tpu.vector_store %arg9[%c0_154, %c0_155], %266 {strides = array<i32>} : memref<8x32xf32, #tpu.memory_space<vmem>>, vector<8x32xf32>,
    %c0_i32_156 = arith.constant 0 : i32
    %c0_157 = arith.constant 0 : index
    %c0_158 = arith.constant 0 : index
    %268 = vector.load %arg8[%c0_157, %c0_158] : memref<8x32xf32, #tpu.memory_space<vmem>>, vector<8x32xf32>
    %c0_159 = arith.constant 0 : index
    %c0_160 = arith.constant 0 : index
    %269 = vector.load %arg9[%c0_159, %c0_160] : memref<8x32xf32, #tpu.memory_space<vmem>>, vector<8x32xf32>
    %c0_161 = arith.constant 0 : index
    %270 = arith.index_cast %c0_i32_156 : i32 to index
    %c0_162 = arith.constant 0 : index
    %c0_163 = arith.constant 0 : index
    %271 = vector.load %arg10[%c0_161, %270, %c0_162, %c0_163] : memref<1x8x8x128xf32, #tpu.memory_space<vmem>>, vector<1x1x8x128xf32>
    %272 = vector.shape_cast %271 : vector<1x1x8x128xf32> to vector<8x128xf32>
    %cst_164 = arith.constant dense<0.000000e+00> : vector<8x128xf32>
    %273 = tpu.matmul %268, %263, %cst_164 {dimension_numbers = #tpu.dot_dimension_numbers<[1], [0], [0], [1], [0, 0, 1, 1], [], []>} : vector<8x32xf32>, vector<32x128xf32>, vector<8x128xf32> -> vector<8x128xf32>
    %274 = arith.addf %272, %273 : vector<8x128xf32>
    %275 = arith.negf %274 : vector<8x128xf32>
    %276 = math.exp %275 : vector<8x128xf32>
    %cst_165 = arith.constant 1.000000e+00 : f32
    %277 = vector.broadcast %cst_165 : f32 to vector<8x128xf32>
    %278 = arith.addf %277, %276 : vector<8x128xf32>
    %279 = arith.divf %277, %278 : vector<8x128xf32>
    %280 = math.tanh %274 : vector<8x128xf32>
    %281 = vector.extract_strided_slice %279 {offsets = [0, 0], sizes = [8, 32], strides = [1, 1]} : vector<8x128xf32> to vector<8x32xf32>
    %282 = vector.extract_strided_slice %279 {offsets = [0, 32], sizes = [8, 32], strides = [1, 1]} : vector<8x128xf32> to vector<8x32xf32>
    %283 = vector.extract_strided_slice %280 {offsets = [0, 64], sizes = [8, 32], strides = [1, 1]} : vector<8x128xf32> to vector<8x32xf32>
    %284 = vector.extract_strided_slice %279 {offsets = [0, 96], sizes = [8, 32], strides = [1, 1]} : vector<8x128xf32> to vector<8x32xf32>
    %285 = arith.mulf %282, %269 : vector<8x32xf32>
    %286 = arith.mulf %281, %283 : vector<8x32xf32>
    %287 = arith.addf %285, %286 : vector<8x32xf32>
    %288 = math.tanh %287 : vector<8x32xf32>
    %289 = arith.mulf %284, %288 : vector<8x32xf32>
    %c0_166 = arith.constant 0 : index
    %c0_167 = arith.constant 0 : index
    %290 = vector.load %arg8[%c0_166, %c0_167] : memref<8x32xf32, #tpu.memory_space<vmem>>, vector<8x32xf32>
    tpu.vector_store %arg8[%c0_166, %c0_167], %289 {strides = array<i32>} : memref<8x32xf32, #tpu.memory_space<vmem>>, vector<8x32xf32>,
    %c0_168 = arith.constant 0 : index
    %c0_169 = arith.constant 0 : index
    %291 = vector.load %arg9[%c0_168, %c0_169] : memref<8x32xf32, #tpu.memory_space<vmem>>, vector<8x32xf32>
    tpu.vector_store %arg9[%c0_168, %c0_169], %287 {strides = array<i32>} : memref<8x32xf32, #tpu.memory_space<vmem>>, vector<8x32xf32>,
    %292 = arith.index_cast %c0_i32_156 : i32 to index
    %c0_170 = arith.constant 0 : index
    %c0_171 = arith.constant 0 : index
    %293 = vector.load %arg5[%292, %c0_170, %c0_171] : memref<8x8x32xf32, #tpu.memory_space<vmem>>, vector<1x8x32xf32>
    %294 = vector.shape_cast %293 : vector<1x8x32xf32> to vector<8x32xf32>
    %295 = vector.shape_cast %289 : vector<8x32xf32> to vector<1x8x32xf32>
    tpu.vector_store %arg5[%292, %c0_170, %c0_171], %295 {strides = array<i32>} : memref<8x8x32xf32, #tpu.memory_space<vmem>>, vector<1x8x32xf32>,
    %c1_i32_172 = arith.constant 1 : i32
    %c0_173 = arith.constant 0 : index
    %c0_174 = arith.constant 0 : index
    %296 = vector.load %arg8[%c0_173, %c0_174] : memref<8x32xf32, #tpu.memory_space<vmem>>, vector<8x32xf32>
    %c0_175 = arith.constant 0 : index
    %c0_176 = arith.constant 0 : index
    %297 = vector.load %arg9[%c0_175, %c0_176] : memref<8x32xf32, #tpu.memory_space<vmem>>, vector<8x32xf32>
    %c0_177 = arith.constant 0 : index
    %298 = arith.index_cast %c1_i32_172 : i32 to index
    %c0_178 = arith.constant 0 : index
    %c0_179 = arith.constant 0 : index
    %299 = vector.load %arg10[%c0_177, %298, %c0_178, %c0_179] : memref<1x8x8x128xf32, #tpu.memory_space<vmem>>, vector<1x1x8x128xf32>
    %300 = vector.shape_cast %299 : vector<1x1x8x128xf32> to vector<8x128xf32>
    %cst_180 = arith.constant dense<0.000000e+00> : vector<8x128xf32>
    %301 = tpu.matmul %296, %263, %cst_180 {dimension_numbers = #tpu.dot_dimension_numbers<[1], [0], [0], [1], [0, 0, 1, 1], [], []>} : vector<8x32xf32>, vector<32x128xf32>, vector<8x128xf32> -> vector<8x128xf32>
    %302 = arith.addf %300, %301 : vector<8x128xf32>
    %303 = arith.negf %302 : vector<8x128xf32>
    %304 = math.exp %303 : vector<8x128xf32>
    %cst_181 = arith.constant 1.000000e+00 : f32
    %305 = vector.broadcast %cst_181 : f32 to vector<8x128xf32>
    %306 = arith.addf %305, %304 : vector<8x128xf32>
    %307 = arith.divf %305, %306 : vector<8x128xf32>
    %308 = math.tanh %302 : vector<8x128xf32>
    %309 = vector.extract_strided_slice %307 {offsets = [0, 0], sizes = [8, 32], strides = [1, 1]} : vector<8x128xf32> to vector<8x32xf32>
    %310 = vector.extract_strided_slice %307 {offsets = [0, 32], sizes = [8, 32], strides = [1, 1]} : vector<8x128xf32> to vector<8x32xf32>
    %311 = vector.extract_strided_slice %308 {offsets = [0, 64], sizes = [8, 32], strides = [1, 1]} : vector<8x128xf32> to vector<8x32xf32>
    %312 = vector.extract_strided_slice %307 {offsets = [0, 96], sizes = [8, 32], strides = [1, 1]} : vector<8x128xf32> to vector<8x32xf32>
    %313 = arith.mulf %310, %297 : vector<8x32xf32>
    %314 = arith.mulf %309, %311 : vector<8x32xf32>
    %315 = arith.addf %313, %314 : vector<8x32xf32>
    %316 = math.tanh %315 : vector<8x32xf32>
    %317 = arith.mulf %312, %316 : vector<8x32xf32>
    %c0_182 = arith.constant 0 : index
    %c0_183 = arith.constant 0 : index
    %318 = vector.load %arg8[%c0_182, %c0_183] : memref<8x32xf32, #tpu.memory_space<vmem>>, vector<8x32xf32>
    tpu.vector_store %arg8[%c0_182, %c0_183], %317 {strides = array<i32>} : memref<8x32xf32, #tpu.memory_space<vmem>>, vector<8x32xf32>,
    %c0_184 = arith.constant 0 : index
    %c0_185 = arith.constant 0 : index
    %319 = vector.load %arg9[%c0_184, %c0_185] : memref<8x32xf32, #tpu.memory_space<vmem>>, vector<8x32xf32>
    tpu.vector_store %arg9[%c0_184, %c0_185], %315 {strides = array<i32>} : memref<8x32xf32, #tpu.memory_space<vmem>>, vector<8x32xf32>,
    %320 = arith.index_cast %c1_i32_172 : i32 to index
    %c0_186 = arith.constant 0 : index
    %c0_187 = arith.constant 0 : index
    %321 = vector.load %arg5[%320, %c0_186, %c0_187] : memref<8x8x32xf32, #tpu.memory_space<vmem>>, vector<1x8x32xf32>
    %322 = vector.shape_cast %321 : vector<1x8x32xf32> to vector<8x32xf32>
    %323 = vector.shape_cast %317 : vector<8x32xf32> to vector<1x8x32xf32>
    tpu.vector_store %arg5[%320, %c0_186, %c0_187], %323 {strides = array<i32>} : memref<8x8x32xf32, #tpu.memory_space<vmem>>, vector<1x8x32xf32>,
    %c2_i32_188 = arith.constant 2 : i32
    %c0_189 = arith.constant 0 : index
    %c0_190 = arith.constant 0 : index
    %324 = vector.load %arg8[%c0_189, %c0_190] : memref<8x32xf32, #tpu.memory_space<vmem>>, vector<8x32xf32>
    %c0_191 = arith.constant 0 : index
    %c0_192 = arith.constant 0 : index
    %325 = vector.load %arg9[%c0_191, %c0_192] : memref<8x32xf32, #tpu.memory_space<vmem>>, vector<8x32xf32>
    %c0_193 = arith.constant 0 : index
    %326 = arith.index_cast %c2_i32_188 : i32 to index
    %c0_194 = arith.constant 0 : index
    %c0_195 = arith.constant 0 : index
    %327 = vector.load %arg10[%c0_193, %326, %c0_194, %c0_195] : memref<1x8x8x128xf32, #tpu.memory_space<vmem>>, vector<1x1x8x128xf32>
    %328 = vector.shape_cast %327 : vector<1x1x8x128xf32> to vector<8x128xf32>
    %cst_196 = arith.constant dense<0.000000e+00> : vector<8x128xf32>
    %329 = tpu.matmul %324, %263, %cst_196 {dimension_numbers = #tpu.dot_dimension_numbers<[1], [0], [0], [1], [0, 0, 1, 1], [], []>} : vector<8x32xf32>, vector<32x128xf32>, vector<8x128xf32> -> vector<8x128xf32>
    %330 = arith.addf %328, %329 : vector<8x128xf32>
    %331 = arith.negf %330 : vector<8x128xf32>
    %332 = math.exp %331 : vector<8x128xf32>
    %cst_197 = arith.constant 1.000000e+00 : f32
    %333 = vector.broadcast %cst_197 : f32 to vector<8x128xf32>
    %334 = arith.addf %333, %332 : vector<8x128xf32>
    %335 = arith.divf %333, %334 : vector<8x128xf32>
    %336 = math.tanh %330 : vector<8x128xf32>
    %337 = vector.extract_strided_slice %335 {offsets = [0, 0], sizes = [8, 32], strides = [1, 1]} : vector<8x128xf32> to vector<8x32xf32>
    %338 = vector.extract_strided_slice %335 {offsets = [0, 32], sizes = [8, 32], strides = [1, 1]} : vector<8x128xf32> to vector<8x32xf32>
    %339 = vector.extract_strided_slice %336 {offsets = [0, 64], sizes = [8, 32], strides = [1, 1]} : vector<8x128xf32> to vector<8x32xf32>
    %340 = vector.extract_strided_slice %335 {offsets = [0, 96], sizes = [8, 32], strides = [1, 1]} : vector<8x128xf32> to vector<8x32xf32>
    %341 = arith.mulf %338, %325 : vector<8x32xf32>
    %342 = arith.mulf %337, %339 : vector<8x32xf32>
    %343 = arith.addf %341, %342 : vector<8x32xf32>
    %344 = math.tanh %343 : vector<8x32xf32>
    %345 = arith.mulf %340, %344 : vector<8x32xf32>
    %c0_198 = arith.constant 0 : index
    %c0_199 = arith.constant 0 : index
    %346 = vector.load %arg8[%c0_198, %c0_199] : memref<8x32xf32, #tpu.memory_space<vmem>>, vector<8x32xf32>
    tpu.vector_store %arg8[%c0_198, %c0_199], %345 {strides = array<i32>} : memref<8x32xf32, #tpu.memory_space<vmem>>, vector<8x32xf32>,
    %c0_200 = arith.constant 0 : index
    %c0_201 = arith.constant 0 : index
    %347 = vector.load %arg9[%c0_200, %c0_201] : memref<8x32xf32, #tpu.memory_space<vmem>>, vector<8x32xf32>
    tpu.vector_store %arg9[%c0_200, %c0_201], %343 {strides = array<i32>} : memref<8x32xf32, #tpu.memory_space<vmem>>, vector<8x32xf32>,
    %348 = arith.index_cast %c2_i32_188 : i32 to index
    %c0_202 = arith.constant 0 : index
    %c0_203 = arith.constant 0 : index
    %349 = vector.load %arg5[%348, %c0_202, %c0_203] : memref<8x8x32xf32, #tpu.memory_space<vmem>>, vector<1x8x32xf32>
    %350 = vector.shape_cast %349 : vector<1x8x32xf32> to vector<8x32xf32>
    %351 = vector.shape_cast %345 : vector<8x32xf32> to vector<1x8x32xf32>
    tpu.vector_store %arg5[%348, %c0_202, %c0_203], %351 {strides = array<i32>} : memref<8x8x32xf32, #tpu.memory_space<vmem>>, vector<1x8x32xf32>,
    %c3_i32_204 = arith.constant 3 : i32
    %c0_205 = arith.constant 0 : index
    %c0_206 = arith.constant 0 : index
    %352 = vector.load %arg8[%c0_205, %c0_206] : memref<8x32xf32, #tpu.memory_space<vmem>>, vector<8x32xf32>
    %c0_207 = arith.constant 0 : index
    %c0_208 = arith.constant 0 : index
    %353 = vector.load %arg9[%c0_207, %c0_208] : memref<8x32xf32, #tpu.memory_space<vmem>>, vector<8x32xf32>
    %c0_209 = arith.constant 0 : index
    %354 = arith.index_cast %c3_i32_204 : i32 to index
    %c0_210 = arith.constant 0 : index
    %c0_211 = arith.constant 0 : index
    %355 = vector.load %arg10[%c0_209, %354, %c0_210, %c0_211] : memref<1x8x8x128xf32, #tpu.memory_space<vmem>>, vector<1x1x8x128xf32>
    %356 = vector.shape_cast %355 : vector<1x1x8x128xf32> to vector<8x128xf32>
    %cst_212 = arith.constant dense<0.000000e+00> : vector<8x128xf32>
    %357 = tpu.matmul %352, %263, %cst_212 {dimension_numbers = #tpu.dot_dimension_numbers<[1], [0], [0], [1], [0, 0, 1, 1], [], []>} : vector<8x32xf32>, vector<32x128xf32>, vector<8x128xf32> -> vector<8x128xf32>
    %358 = arith.addf %356, %357 : vector<8x128xf32>
    %359 = arith.negf %358 : vector<8x128xf32>
    %360 = math.exp %359 : vector<8x128xf32>
    %cst_213 = arith.constant 1.000000e+00 : f32
    %361 = vector.broadcast %cst_213 : f32 to vector<8x128xf32>
    %362 = arith.addf %361, %360 : vector<8x128xf32>
    %363 = arith.divf %361, %362 : vector<8x128xf32>
    %364 = math.tanh %358 : vector<8x128xf32>
    %365 = vector.extract_strided_slice %363 {offsets = [0, 0], sizes = [8, 32], strides = [1, 1]} : vector<8x128xf32> to vector<8x32xf32>
    %366 = vector.extract_strided_slice %363 {offsets = [0, 32], sizes = [8, 32], strides = [1, 1]} : vector<8x128xf32> to vector<8x32xf32>
    %367 = vector.extract_strided_slice %364 {offsets = [0, 64], sizes = [8, 32], strides = [1, 1]} : vector<8x128xf32> to vector<8x32xf32>
    %368 = vector.extract_strided_slice %363 {offsets = [0, 96], sizes = [8, 32], strides = [1, 1]} : vector<8x128xf32> to vector<8x32xf32>
    %369 = arith.mulf %366, %353 : vector<8x32xf32>
    %370 = arith.mulf %365, %367 : vector<8x32xf32>
    %371 = arith.addf %369, %370 : vector<8x32xf32>
    %372 = math.tanh %371 : vector<8x32xf32>
    %373 = arith.mulf %368, %372 : vector<8x32xf32>
    %c0_214 = arith.constant 0 : index
    %c0_215 = arith.constant 0 : index
    %374 = vector.load %arg8[%c0_214, %c0_215] : memref<8x32xf32, #tpu.memory_space<vmem>>, vector<8x32xf32>
    tpu.vector_store %arg8[%c0_214, %c0_215], %373 {strides = array<i32>} : memref<8x32xf32, #tpu.memory_space<vmem>>, vector<8x32xf32>,
    %c0_216 = arith.constant 0 : index
    %c0_217 = arith.constant 0 : index
    %375 = vector.load %arg9[%c0_216, %c0_217] : memref<8x32xf32, #tpu.memory_space<vmem>>, vector<8x32xf32>
    tpu.vector_store %arg9[%c0_216, %c0_217], %371 {strides = array<i32>} : memref<8x32xf32, #tpu.memory_space<vmem>>, vector<8x32xf32>,
    %376 = arith.index_cast %c3_i32_204 : i32 to index
    %c0_218 = arith.constant 0 : index
    %c0_219 = arith.constant 0 : index
    %377 = vector.load %arg5[%376, %c0_218, %c0_219] : memref<8x8x32xf32, #tpu.memory_space<vmem>>, vector<1x8x32xf32>
    %378 = vector.shape_cast %377 : vector<1x8x32xf32> to vector<8x32xf32>
    %379 = vector.shape_cast %373 : vector<8x32xf32> to vector<1x8x32xf32>
    tpu.vector_store %arg5[%376, %c0_218, %c0_219], %379 {strides = array<i32>} : memref<8x8x32xf32, #tpu.memory_space<vmem>>, vector<1x8x32xf32>,
    %c4_i32_220 = arith.constant 4 : i32
    %c0_221 = arith.constant 0 : index
    %c0_222 = arith.constant 0 : index
    %380 = vector.load %arg8[%c0_221, %c0_222] : memref<8x32xf32, #tpu.memory_space<vmem>>, vector<8x32xf32>
    %c0_223 = arith.constant 0 : index
    %c0_224 = arith.constant 0 : index
    %381 = vector.load %arg9[%c0_223, %c0_224] : memref<8x32xf32, #tpu.memory_space<vmem>>, vector<8x32xf32>
    %c0_225 = arith.constant 0 : index
    %382 = arith.index_cast %c4_i32_220 : i32 to index
    %c0_226 = arith.constant 0 : index
    %c0_227 = arith.constant 0 : index
    %383 = vector.load %arg10[%c0_225, %382, %c0_226, %c0_227] : memref<1x8x8x128xf32, #tpu.memory_space<vmem>>, vector<1x1x8x128xf32>
    %384 = vector.shape_cast %383 : vector<1x1x8x128xf32> to vector<8x128xf32>
    %cst_228 = arith.constant dense<0.000000e+00> : vector<8x128xf32>
    %385 = tpu.matmul %380, %263, %cst_228 {dimension_numbers = #tpu.dot_dimension_numbers<[1], [0], [0], [1], [0, 0, 1, 1], [], []>} : vector<8x32xf32>, vector<32x128xf32>, vector<8x128xf32> -> vector<8x128xf32>
    %386 = arith.addf %384, %385 : vector<8x128xf32>
    %387 = arith.negf %386 : vector<8x128xf32>
    %388 = math.exp %387 : vector<8x128xf32>
    %cst_229 = arith.constant 1.000000e+00 : f32
    %389 = vector.broadcast %cst_229 : f32 to vector<8x128xf32>
    %390 = arith.addf %389, %388 : vector<8x128xf32>
    %391 = arith.divf %389, %390 : vector<8x128xf32>
    %392 = math.tanh %386 : vector<8x128xf32>
    %393 = vector.extract_strided_slice %391 {offsets = [0, 0], sizes = [8, 32], strides = [1, 1]} : vector<8x128xf32> to vector<8x32xf32>
    %394 = vector.extract_strided_slice %391 {offsets = [0, 32], sizes = [8, 32], strides = [1, 1]} : vector<8x128xf32> to vector<8x32xf32>
    %395 = vector.extract_strided_slice %392 {offsets = [0, 64], sizes = [8, 32], strides = [1, 1]} : vector<8x128xf32> to vector<8x32xf32>
    %396 = vector.extract_strided_slice %391 {offsets = [0, 96], sizes = [8, 32], strides = [1, 1]} : vector<8x128xf32> to vector<8x32xf32>
    %397 = arith.mulf %394, %381 : vector<8x32xf32>
    %398 = arith.mulf %393, %395 : vector<8x32xf32>
    %399 = arith.addf %397, %398 : vector<8x32xf32>
    %400 = math.tanh %399 : vector<8x32xf32>
    %401 = arith.mulf %396, %400 : vector<8x32xf32>
    %c0_230 = arith.constant 0 : index
    %c0_231 = arith.constant 0 : index
    %402 = vector.load %arg8[%c0_230, %c0_231] : memref<8x32xf32, #tpu.memory_space<vmem>>, vector<8x32xf32>
    tpu.vector_store %arg8[%c0_230, %c0_231], %401 {strides = array<i32>} : memref<8x32xf32, #tpu.memory_space<vmem>>, vector<8x32xf32>,
    %c0_232 = arith.constant 0 : index
    %c0_233 = arith.constant 0 : index
    %403 = vector.load %arg9[%c0_232, %c0_233] : memref<8x32xf32, #tpu.memory_space<vmem>>, vector<8x32xf32>
    tpu.vector_store %arg9[%c0_232, %c0_233], %399 {strides = array<i32>} : memref<8x32xf32, #tpu.memory_space<vmem>>, vector<8x32xf32>,
    %404 = arith.index_cast %c4_i32_220 : i32 to index
    %c0_234 = arith.constant 0 : index
    %c0_235 = arith.constant 0 : index
    %405 = vector.load %arg5[%404, %c0_234, %c0_235] : memref<8x8x32xf32, #tpu.memory_space<vmem>>, vector<1x8x32xf32>
    %406 = vector.shape_cast %405 : vector<1x8x32xf32> to vector<8x32xf32>
    %407 = vector.shape_cast %401 : vector<8x32xf32> to vector<1x8x32xf32>
    tpu.vector_store %arg5[%404, %c0_234, %c0_235], %407 {strides = array<i32>} : memref<8x8x32xf32, #tpu.memory_space<vmem>>, vector<1x8x32xf32>,
    %c5_i32_236 = arith.constant 5 : i32
    %c0_237 = arith.constant 0 : index
    %c0_238 = arith.constant 0 : index
    %408 = vector.load %arg8[%c0_237, %c0_238] : memref<8x32xf32, #tpu.memory_space<vmem>>, vector<8x32xf32>
    %c0_239 = arith.constant 0 : index
    %c0_240 = arith.constant 0 : index
    %409 = vector.load %arg9[%c0_239, %c0_240] : memref<8x32xf32, #tpu.memory_space<vmem>>, vector<8x32xf32>
    %c0_241 = arith.constant 0 : index
    %410 = arith.index_cast %c5_i32_236 : i32 to index
    %c0_242 = arith.constant 0 : index
    %c0_243 = arith.constant 0 : index
    %411 = vector.load %arg10[%c0_241, %410, %c0_242, %c0_243] : memref<1x8x8x128xf32, #tpu.memory_space<vmem>>, vector<1x1x8x128xf32>
    %412 = vector.shape_cast %411 : vector<1x1x8x128xf32> to vector<8x128xf32>
    %cst_244 = arith.constant dense<0.000000e+00> : vector<8x128xf32>
    %413 = tpu.matmul %408, %263, %cst_244 {dimension_numbers = #tpu.dot_dimension_numbers<[1], [0], [0], [1], [0, 0, 1, 1], [], []>} : vector<8x32xf32>, vector<32x128xf32>, vector<8x128xf32> -> vector<8x128xf32>
    %414 = arith.addf %412, %413 : vector<8x128xf32>
    %415 = arith.negf %414 : vector<8x128xf32>
    %416 = math.exp %415 : vector<8x128xf32>
    %cst_245 = arith.constant 1.000000e+00 : f32
    %417 = vector.broadcast %cst_245 : f32 to vector<8x128xf32>
    %418 = arith.addf %417, %416 : vector<8x128xf32>
    %419 = arith.divf %417, %418 : vector<8x128xf32>
    %420 = math.tanh %414 : vector<8x128xf32>
    %421 = vector.extract_strided_slice %419 {offsets = [0, 0], sizes = [8, 32], strides = [1, 1]} : vector<8x128xf32> to vector<8x32xf32>
    %422 = vector.extract_strided_slice %419 {offsets = [0, 32], sizes = [8, 32], strides = [1, 1]} : vector<8x128xf32> to vector<8x32xf32>
    %423 = vector.extract_strided_slice %420 {offsets = [0, 64], sizes = [8, 32], strides = [1, 1]} : vector<8x128xf32> to vector<8x32xf32>
    %424 = vector.extract_strided_slice %419 {offsets = [0, 96], sizes = [8, 32], strides = [1, 1]} : vector<8x128xf32> to vector<8x32xf32>
    %425 = arith.mulf %422, %409 : vector<8x32xf32>
    %426 = arith.mulf %421, %423 : vector<8x32xf32>
    %427 = arith.addf %425, %426 : vector<8x32xf32>
    %428 = math.tanh %427 : vector<8x32xf32>
    %429 = arith.mulf %424, %428 : vector<8x32xf32>
    %c0_246 = arith.constant 0 : index
    %c0_247 = arith.constant 0 : index
    %430 = vector.load %arg8[%c0_246, %c0_247] : memref<8x32xf32, #tpu.memory_space<vmem>>, vector<8x32xf32>
    tpu.vector_store %arg8[%c0_246, %c0_247], %429 {strides = array<i32>} : memref<8x32xf32, #tpu.memory_space<vmem>>, vector<8x32xf32>,
    %c0_248 = arith.constant 0 : index
    %c0_249 = arith.constant 0 : index
    %431 = vector.load %arg9[%c0_248, %c0_249] : memref<8x32xf32, #tpu.memory_space<vmem>>, vector<8x32xf32>
    tpu.vector_store %arg9[%c0_248, %c0_249], %427 {strides = array<i32>} : memref<8x32xf32, #tpu.memory_space<vmem>>, vector<8x32xf32>,
    %432 = arith.index_cast %c5_i32_236 : i32 to index
    %c0_250 = arith.constant 0 : index
    %c0_251 = arith.constant 0 : index
    %433 = vector.load %arg5[%432, %c0_250, %c0_251] : memref<8x8x32xf32, #tpu.memory_space<vmem>>, vector<1x8x32xf32>
    %434 = vector.shape_cast %433 : vector<1x8x32xf32> to vector<8x32xf32>
    %435 = vector.shape_cast %429 : vector<8x32xf32> to vector<1x8x32xf32>
    tpu.vector_store %arg5[%432, %c0_250, %c0_251], %435 {strides = array<i32>} : memref<8x8x32xf32, #tpu.memory_space<vmem>>, vector<1x8x32xf32>,
    %c6_i32_252 = arith.constant 6 : i32
    %c0_253 = arith.constant 0 : index
    %c0_254 = arith.constant 0 : index
    %436 = vector.load %arg8[%c0_253, %c0_254] : memref<8x32xf32, #tpu.memory_space<vmem>>, vector<8x32xf32>
    %c0_255 = arith.constant 0 : index
    %c0_256 = arith.constant 0 : index
    %437 = vector.load %arg9[%c0_255, %c0_256] : memref<8x32xf32, #tpu.memory_space<vmem>>, vector<8x32xf32>
    %c0_257 = arith.constant 0 : index
    %438 = arith.index_cast %c6_i32_252 : i32 to index
    %c0_258 = arith.constant 0 : index
    %c0_259 = arith.constant 0 : index
    %439 = vector.load %arg10[%c0_257, %438, %c0_258, %c0_259] : memref<1x8x8x128xf32, #tpu.memory_space<vmem>>, vector<1x1x8x128xf32>
    %440 = vector.shape_cast %439 : vector<1x1x8x128xf32> to vector<8x128xf32>
    %cst_260 = arith.constant dense<0.000000e+00> : vector<8x128xf32>
    %441 = tpu.matmul %436, %263, %cst_260 {dimension_numbers = #tpu.dot_dimension_numbers<[1], [0], [0], [1], [0, 0, 1, 1], [], []>} : vector<8x32xf32>, vector<32x128xf32>, vector<8x128xf32> -> vector<8x128xf32>
    %442 = arith.addf %440, %441 : vector<8x128xf32>
    %443 = arith.negf %442 : vector<8x128xf32>
    %444 = math.exp %443 : vector<8x128xf32>
    %cst_261 = arith.constant 1.000000e+00 : f32
    %445 = vector.broadcast %cst_261 : f32 to vector<8x128xf32>
    %446 = arith.addf %445, %444 : vector<8x128xf32>
    %447 = arith.divf %445, %446 : vector<8x128xf32>
    %448 = math.tanh %442 : vector<8x128xf32>
    %449 = vector.extract_strided_slice %447 {offsets = [0, 0], sizes = [8, 32], strides = [1, 1]} : vector<8x128xf32> to vector<8x32xf32>
    %450 = vector.extract_strided_slice %447 {offsets = [0, 32], sizes = [8, 32], strides = [1, 1]} : vector<8x128xf32> to vector<8x32xf32>
    %451 = vector.extract_strided_slice %448 {offsets = [0, 64], sizes = [8, 32], strides = [1, 1]} : vector<8x128xf32> to vector<8x32xf32>
    %452 = vector.extract_strided_slice %447 {offsets = [0, 96], sizes = [8, 32], strides = [1, 1]} : vector<8x128xf32> to vector<8x32xf32>
    %453 = arith.mulf %450, %437 : vector<8x32xf32>
    %454 = arith.mulf %449, %451 : vector<8x32xf32>
    %455 = arith.addf %453, %454 : vector<8x32xf32>
    %456 = math.tanh %455 : vector<8x32xf32>
    %457 = arith.mulf %452, %456 : vector<8x32xf32>
    %c0_262 = arith.constant 0 : index
    %c0_263 = arith.constant 0 : index
    %458 = vector.load %arg8[%c0_262, %c0_263] : memref<8x32xf32, #tpu.memory_space<vmem>>, vector<8x32xf32>
    tpu.vector_store %arg8[%c0_262, %c0_263], %457 {strides = array<i32>} : memref<8x32xf32, #tpu.memory_space<vmem>>, vector<8x32xf32>,
    %c0_264 = arith.constant 0 : index
    %c0_265 = arith.constant 0 : index
    %459 = vector.load %arg9[%c0_264, %c0_265] : memref<8x32xf32, #tpu.memory_space<vmem>>, vector<8x32xf32>
    tpu.vector_store %arg9[%c0_264, %c0_265], %455 {strides = array<i32>} : memref<8x32xf32, #tpu.memory_space<vmem>>, vector<8x32xf32>,
    %460 = arith.index_cast %c6_i32_252 : i32 to index
    %c0_266 = arith.constant 0 : index
    %c0_267 = arith.constant 0 : index
    %461 = vector.load %arg5[%460, %c0_266, %c0_267] : memref<8x8x32xf32, #tpu.memory_space<vmem>>, vector<1x8x32xf32>
    %462 = vector.shape_cast %461 : vector<1x8x32xf32> to vector<8x32xf32>
    %463 = vector.shape_cast %457 : vector<8x32xf32> to vector<1x8x32xf32>
    tpu.vector_store %arg5[%460, %c0_266, %c0_267], %463 {strides = array<i32>} : memref<8x8x32xf32, #tpu.memory_space<vmem>>, vector<1x8x32xf32>,
    %c7_i32_268 = arith.constant 7 : i32
    %c0_269 = arith.constant 0 : index
    %c0_270 = arith.constant 0 : index
    %464 = vector.load %arg8[%c0_269, %c0_270] : memref<8x32xf32, #tpu.memory_space<vmem>>, vector<8x32xf32>
    %c0_271 = arith.constant 0 : index
    %c0_272 = arith.constant 0 : index
    %465 = vector.load %arg9[%c0_271, %c0_272] : memref<8x32xf32, #tpu.memory_space<vmem>>, vector<8x32xf32>
    %c0_273 = arith.constant 0 : index
    %466 = arith.index_cast %c7_i32_268 : i32 to index
    %c0_274 = arith.constant 0 : index
    %c0_275 = arith.constant 0 : index
    %467 = vector.load %arg10[%c0_273, %466, %c0_274, %c0_275] : memref<1x8x8x128xf32, #tpu.memory_space<vmem>>, vector<1x1x8x128xf32>
    %468 = vector.shape_cast %467 : vector<1x1x8x128xf32> to vector<8x128xf32>
    %cst_276 = arith.constant dense<0.000000e+00> : vector<8x128xf32>
    %469 = tpu.matmul %464, %263, %cst_276 {dimension_numbers = #tpu.dot_dimension_numbers<[1], [0], [0], [1], [0, 0, 1, 1], [], []>} : vector<8x32xf32>, vector<32x128xf32>, vector<8x128xf32> -> vector<8x128xf32>
    %470 = arith.addf %468, %469 : vector<8x128xf32>
    %471 = arith.negf %470 : vector<8x128xf32>
    %472 = math.exp %471 : vector<8x128xf32>
    %cst_277 = arith.constant 1.000000e+00 : f32
    %473 = vector.broadcast %cst_277 : f32 to vector<8x128xf32>
    %474 = arith.addf %473, %472 : vector<8x128xf32>
    %475 = arith.divf %473, %474 : vector<8x128xf32>
    %476 = math.tanh %470 : vector<8x128xf32>
    %477 = vector.extract_strided_slice %475 {offsets = [0, 0], sizes = [8, 32], strides = [1, 1]} : vector<8x128xf32> to vector<8x32xf32>
    %478 = vector.extract_strided_slice %475 {offsets = [0, 32], sizes = [8, 32], strides = [1, 1]} : vector<8x128xf32> to vector<8x32xf32>
    %479 = vector.extract_strided_slice %476 {offsets = [0, 64], sizes = [8, 32], strides = [1, 1]} : vector<8x128xf32> to vector<8x32xf32>
    %480 = vector.extract_strided_slice %475 {offsets = [0, 96], sizes = [8, 32], strides = [1, 1]} : vector<8x128xf32> to vector<8x32xf32>
    %481 = arith.mulf %478, %465 : vector<8x32xf32>
    %482 = arith.mulf %477, %479 : vector<8x32xf32>
    %483 = arith.addf %481, %482 : vector<8x32xf32>
    %484 = math.tanh %483 : vector<8x32xf32>
    %485 = arith.mulf %480, %484 : vector<8x32xf32>
    %c0_278 = arith.constant 0 : index
    %c0_279 = arith.constant 0 : index
    %486 = vector.load %arg8[%c0_278, %c0_279] : memref<8x32xf32, #tpu.memory_space<vmem>>, vector<8x32xf32>
    tpu.vector_store %arg8[%c0_278, %c0_279], %485 {strides = array<i32>} : memref<8x32xf32, #tpu.memory_space<vmem>>, vector<8x32xf32>,
    %c0_280 = arith.constant 0 : index
    %c0_281 = arith.constant 0 : index
    %487 = vector.load %arg9[%c0_280, %c0_281] : memref<8x32xf32, #tpu.memory_space<vmem>>, vector<8x32xf32>
    tpu.vector_store %arg9[%c0_280, %c0_281], %483 {strides = array<i32>} : memref<8x32xf32, #tpu.memory_space<vmem>>, vector<8x32xf32>,
    %488 = arith.index_cast %c7_i32_268 : i32 to index
    %c0_282 = arith.constant 0 : index
    %c0_283 = arith.constant 0 : index
    %489 = vector.load %arg5[%488, %c0_282, %c0_283] : memref<8x8x32xf32, #tpu.memory_space<vmem>>, vector<1x8x32xf32>
    %490 = vector.shape_cast %489 : vector<1x8x32xf32> to vector<8x32xf32>
    %491 = vector.shape_cast %485 : vector<8x32xf32> to vector<1x8x32xf32>
    tpu.vector_store %arg5[%488, %c0_282, %c0_283], %491 {strides = array<i32>} : memref<8x8x32xf32, #tpu.memory_space<vmem>>, vector<1x8x32xf32>,
    %c8_i32_284 = arith.constant 8 : i32
    %c0_285 = arith.constant 0 : index
    %c0_286 = arith.constant 0 : index
    %492 = vector.load %arg8[%c0_285, %c0_286] : memref<8x32xf32, #tpu.memory_space<vmem>>, vector<8x32xf32>
    %c1 = arith.constant 1 : index
    %c0_287 = arith.constant 0 : index
    %c0_288 = arith.constant 0 : index
    %493 = vector.load %arg6[%c1, %c0_287, %c0_288] : memref<2x8x32xf32, #tpu.memory_space<vmem>>, vector<1x8x32xf32>
    %494 = vector.shape_cast %493 : vector<1x8x32xf32> to vector<8x32xf32>
    %495 = vector.shape_cast %492 : vector<8x32xf32> to vector<1x8x32xf32>
    tpu.vector_store %arg6[%c1, %c0_287, %c0_288], %495 {strides = array<i32>} : memref<2x8x32xf32, #tpu.memory_space<vmem>>, vector<1x8x32xf32>,
    %c0_289 = arith.constant 0 : index
    %c0_290 = arith.constant 0 : index
    %496 = vector.load %arg9[%c0_289, %c0_290] : memref<8x32xf32, #tpu.memory_space<vmem>>, vector<8x32xf32>
    %c1_291 = arith.constant 1 : index
    %c0_292 = arith.constant 0 : index
    %c0_293 = arith.constant 0 : index
    %497 = vector.load %arg7[%c1_291, %c0_292, %c0_293] : memref<2x8x32xf32, #tpu.memory_space<vmem>>, vector<1x8x32xf32>
    %498 = vector.shape_cast %497 : vector<1x8x32xf32> to vector<8x32xf32>
    %499 = vector.shape_cast %496 : vector<8x32xf32> to vector<1x8x32xf32>
    tpu.vector_store %arg7[%c1_291, %c0_292, %c0_293], %499 {strides = array<i32>} : memref<2x8x32xf32, #tpu.memory_space<vmem>>, vector<1x8x32xf32>,
    return
  }
}

</mosaic_0001>

<llo_original>
// kernel: encoder_forward.1
$region0: #{encoder_forward.1}
  #allocation0 [shape = 'u32[]', space=smem, size = 0x4, offset = 0x4, fixed_abs, tag = 'smem constant byte address 0x4 - core index']
  #allocation1 [shape = 'u32[72,128]{1,0:T(1,128)}', space=vmem, size = 0x9000, scoped, tag = 'internal scratch']
  #allocation2 [shape = 'f32[8,32]{1,0:T(8,128)}', space=vmem, size = 0x1000, scoped, tag = 'scratch operand']
  #allocation3 [shape = 'f32[8,32]{1,0:T(8,128)}', space=vmem, size = 0x1000, scoped, tag = 'scratch operand']
  #allocation4 [shape = 'f32[1,8,8,128]{3,2,1,0:T(8,128)}', space=vmem, size = 0x8000, scoped, tag = 'scratch operand']
  %s0 = inlined_call_operand.vmem [shape: f32[8,8,128], index: 0, kind: input, shape index: {}]
  %s1 = inlined_call_operand.vmem [shape: f32[32,128], index: 1, kind: input, shape index: {}]
  %s2 = inlined_call_operand.vmem [shape: f32[32,128], index: 2, kind: input, shape index: {}]
  %s3 = inlined_call_operand.vmem [shape: f32[32,128], index: 3, kind: input, shape index: {}]
  %s4 = inlined_call_operand.vmem [shape: f32[1,128], index: 4, kind: input, shape index: {}]
  %s5 = inlined_call_operand.vmem [shape: f32[8,8,32], index: 5, kind: output, shape index: {0}]
  %s6 = inlined_call_operand.vmem [shape: f32[2,8,32], index: 6, kind: output, shape index: {1}]
  %s7 = inlined_call_operand.vmem [shape: f32[2,8,32], index: 7, kind: output, shape index: {2}]
  %8 = xla_tuple %s5, %s6, %s7
  %s9 = sld [smem:[#allocation0]]
  $region46: #{encoder_forward.1} parent=0
    _
  %s11 = ssub.s32 1, %s9
  %s12 = scalar_select 0, %s11, %s9
  // Predicated region
  $region2: #{encoder_forward.1} parent=0 // pred_check
    _
  $region3: #{encoder_forward.1} parent=0 // pred_check_branch
    %14 = sbr.rel (0) target = $region5
  $region4: #{encoder_forward.1} parent=0 // pred_region
    _
  $region5: #{encoder_forward.1} parent=0 // pred_fallthru
    _
  // Predicated region
  $region6: #{encoder_forward.1} parent=0 // pred_check
    _
  $region7: #{encoder_forward.1} parent=0 // pred_check_branch
    %16 = sbr.rel (0) target = $region9
  $region8: #{encoder_forward.1} parent=0 // pred_region
    _
  $region9: #{encoder_forward.1} parent=0 // pred_fallthru
    _
  // Predicated region
  $region10: #{encoder_forward.1} parent=0 // pred_check
    _
  $region11: #{encoder_forward.1} parent=0 // pred_check_branch
    %18 = sbr.rel (0) target = $region13
  $region12: #{encoder_forward.1} parent=0 // pred_region
    _
  $region13: #{encoder_forward.1} parent=0 // pred_fallthru
    _
  // Predicated region
  $region14: #{encoder_forward.1} parent=0 // pred_check
    _
  $region15: #{encoder_forward.1} parent=0 // pred_check_branch
    %20 = sbr.rel (0) target = $region17
  $region16: #{encoder_forward.1} parent=0 // pred_region
    _
  $region17: #{encoder_forward.1} parent=0 // pred_fallthru
    _
  // Predicated region
  $region18: #{encoder_forward.1} parent=0 // pred_check
    _
  $region19: #{encoder_forward.1} parent=0 // pred_check_branch
    %22 = sbr.rel (0) target = $region21
  $region20: #{encoder_forward.1} parent=0 // pred_region
    _
  $region21: #{encoder_forward.1} parent=0 // pred_fallthru
    _
  %v23 = vld [vmem:[%s1] sm:$0xff]
  %v24 = vld [vmem:[%s1 + $0x8] sm:$0xff]
  %v25 = vld [vmem:[%s1 + $0x10] sm:$0xff]
  %v26 = vld [vmem:[%s1 + $0x18] sm:$0xff]
  %v27 = vld [vmem:[%s3] sm:$0xff]
  %v28 = vld [vmem:[%s3 + $0x8] sm:$0xff]
  %v29 = vld [vmem:[%s3 + $0x10] sm:$0xff]
  %v30 = vld [vmem:[%s3 + $0x18] sm:$0xff]
  %v31 = vld [vmem:[%s4] sm:$0x1]
  %vm32 = vcmask 261120
  %33 = vst.msk [vmem:[#allocation2] sm:$0xff] %vm32, 0.0
  %34 = vst.msk [vmem:[#allocation3] sm:$0xff] %vm32, 0.0
  %v35 = vld [vmem:[#allocation2] sm:$0xff]
  %v36 = vld [vmem:[#allocation3] sm:$0xff]
  %v37 = vld [vmem:[%s0] sm:$0xff]
  %v39 = vsel %vm32, %v35, 0
  %41 = vmatpush.msra.mxu0 0.0
  %42 = vmatpush.msra.mxu0 0.0
  %43 = vmatpush.msra.mxu0 0.0
  %44 = vmatpush.msra.mxu0 0.0
  %45 = vmatpush.msra.mxu0 0.0
  %46 = vmatpush.msra.mxu0 0.0
  %47 = vmatpush.msra.mxu0 0.0
  %48 = vmatpush.msra.mxu0 0.0
  %49 = vmatpush.msra.mxu0 0.0
  %50 = vmatpush.msra.mxu0 0.0
  %51 = vmatpush.msra.mxu0 0.0
  %52 = vmatpush.msra.mxu0 0.0
  %53 = vmatpush.msra.mxu0 %v26
  %54 = vmatpush.msra.mxu0 %v25
  %55 = vmatpush.msra.mxu0 %v24
  %56 = vmatpush.msra.mxu0 %v23
  %57 = vmatmul.f32.gmra.mxu0 %v39
  %v58 = vpop.f32.mrf.mxu0
  %v59 = vadd.f32 0.0, %v58
  %60 = vdwg.mxu0
  %v61 = vadd.f32 %v37, %v59
  %v62 = vxor.u32 %v61, 2147483648
  %v63 = vmul.f32 %v62, 1.442695
  %v64 = vpow.pop %v63
  %v65 = vadd.f32 %v64, 1.0
  %v66 = vrcp.pop %v65
  %v67 = vmul.f32 %v65, %v66
  %v68 = vsub.f32 1.0, %v67
  %v69 = vmul.f32 %v66, %v68
  %v70 = vadd.f32 %v66, %v69
  %vm71 = vweird.f32 %v65
  %vm72 = vweird.f32 %v66
  %vm73 = vmor %vm71, %vm72
  %v74 = vsel %vm73, %v66, %v70
  %v75 = vand.u32 2147483647, %v65
  %vm76 = vcmp.eq.f32.partialorder %v75, 8.507059e+37
  %v77 = vand.u32 %v65, 2147483648
  %v78 = vor.u32 1.1754944e-38, %v77
  %v79 = vsel %vm76, %v78, %v74
  %v80 = vmul.f32 1.0, %v79
  %v81 = vtanh.pop %v61
  %83 = vrot.lane.b32.xlu0 %v36, 32
  %v84 = vpop.permute.xlu0 %83
  %v86 = vmul.f32 %v80, %v84
  %88 = vrot.lane.b32.xlu0 %v81, 64
  %v89 = vpop.permute.xlu0 %88
  %v91 = vmul.f32 %v80, %v89
  %93 = vrot.lane.b32.xlu0 %v91, 32
  %v94 = vpop.permute.xlu0 %93
  %v96 = vadd.f32 %v86, %v94
  %v97 = vtanh.pop %v96
  %99 = vrot.lane.b32.xlu0 %v97, 64
  %v100 = vpop.permute.xlu0 %99
  %v102 = vmul.f32 %v80, %v100
  %104 = vrot.lane.b32.xlu0 %v102, 32
  %v105 = vpop.permute.xlu0 %104
  %107 = vst.msk [vmem:[#allocation2] sm:$0xff] %vm32, %v105
  %109 = vrot.lane.b32.xlu0 %v96, 96
  %v110 = vpop.permute.xlu0 %109
  %112 = vst.msk [vmem:[#allocation3] sm:$0xff] %vm32, %v110
  %v114 = vperm.slane %v31, 0
  %v116 = vsel %vm32, %v105, 0
  %118 = vmatpush.msra.mxu0 0.0
  %119 = vmatpush.msra.mxu0 0.0
  %120 = vmatpush.msra.mxu0 0.0
  %121 = vmatpush.msra.mxu0 0.0
  %122 = vmatpush.msra.mxu0 0.0
  %123 = vmatpush.msra.mxu0 0.0
  %124 = vmatpush.msra.mxu0 0.0
  %125 = vmatpush.msra.mxu0 0.0
  %126 = vmatpush.msra.mxu0 0.0
  %127 = vmatpush.msra.mxu0 0.0
  %128 = vmatpush.msra.mxu0 0.0
  %129 = vmatpush.msra.mxu0 0.0
  %130 = vmatpush.msra.mxu0 %v30
  %131 = vmatpush.msra.mxu0 %v29
  %132 = vmatpush.msra.mxu0 %v28
  %133 = vmatpush.msra.mxu0 %v27
  %134 = vmatmul.f32.gmra.mxu0 %v116
  %v135 = vpop.f32.mrf.mxu0
  %v136 = vadd.f32 %v114, %v135
  %137 = vdwg.mxu0
  %138 = vst [vmem:[#allocation4] sm:$0xff] %v136
  %v139 = vld [vmem:[#allocation2] sm:$0xff]
  %v140 = vld [vmem:[#allocation3] sm:$0xff]
  %s141 = scalar_lea.vmem %s0, 8
  %v142 = vld [vmem:[%s141] sm:$0xff]
  %v144 = vsel %vm32, %v139, 0
  %146 = vmatpush.msra.mxu0 0.0
  %147 = vmatpush.msra.mxu0 0.0
  %148 = vmatpush.msra.mxu0 0.0
  %149 = vmatpush.msra.mxu0 0.0
  %150 = vmatpush.msra.mxu0 0.0
  %151 = vmatpush.msra.mxu0 0.0
  %152 = vmatpush.msra.mxu0 0.0
  %153 = vmatpush.msra.mxu0 0.0
  %154 = vmatpush.msra.mxu0 0.0
  %155 = vmatpush.msra.mxu0 0.0
  %156 = vmatpush.msra.mxu0 0.0
  %157 = vmatpush.msra.mxu0 0.0
  %158 = vmatpush.msra.mxu0 %v26
  %159 = vmatpush.msra.mxu0 %v25
  %160 = vmatpush.msra.mxu0 %v24
  %161 = vmatpush.msra.mxu0 %v23
  %162 = vmatmul.f32.gmra.mxu0 %v144
  %v163 = vpop.f32.mrf.mxu0
  %v164 = vadd.f32 0.0, %v163
  %165 = vdwg.mxu0
  %v166 = vadd.f32 %v142, %v164
  %v167 = vxor.u32 %v166, 2147483648
  %v168 = vmul.f32 %v167, 1.442695
  %v169 = vpow.pop %v168
  %v170 = vadd.f32 %v169, 1.0
  %v171 = vrcp.pop %v170
  %v172 = vmul.f32 %v170, %v171
  %v173 = vsub.f32 1.0, %v172
  %v174 = vmul.f32 %v171, %v173
  %v175 = vadd.f32 %v171, %v174
  %vm176 = vweird.f32 %v170
  %vm177 = vweird.f32 %v171
  %vm178 = vmor %vm176, %vm177
  %v179 = vsel %vm178, %v171, %v175
  %v180 = vand.u32 2147483647, %v170
  %vm181 = vcmp.eq.f32.partialorder %v180, 8.507059e+37
  %v182 = vand.u32 %v170, 2147483648
  %v183 = vor.u32 1.1754944e-38, %v182
  %v184 = vsel %vm181, %v183, %v179
  %v185 = vmul.f32 1.0, %v184
  %v186 = vtanh.pop %v166
  %188 = vrot.lane.b32.xlu0 %v140, 32
  %v189 = vpop.permute.xlu0 %188
  %v191 = vmul.f32 %v185, %v189
  %193 = vrot.lane.b32.xlu0 %v186, 64
  %v194 = vpop.permute.xlu0 %193
  %v196 = vmul.f32 %v185, %v194
  %198 = vrot.lane.b32.xlu0 %v196, 32
  %v199 = vpop.permute.xlu0 %198
  %v201 = vadd.f32 %v191, %v199
  %v202 = vtanh.pop %v201
  %204 = vrot.lane.b32.xlu0 %v202, 64
  %v205 = vpop.permute.xlu0 %204
  %v207 = vmul.f32 %v185, %v205
  %209 = vrot.lane.b32.xlu0 %v207, 32
  %v210 = vpop.permute.xlu0 %209
  %212 = vst.msk [vmem:[#allocation2] sm:$0xff] %vm32, %v210
  %214 = vrot.lane.b32.xlu0 %v201, 96
  %v215 = vpop.permute.xlu0 %214
  %217 = vst.msk [vmem:[#allocation3] sm:$0xff] %vm32, %v215
  %v218 = vsel %vm32, %v210, 0
  %220 = vmatpush.msra.mxu0 0.0
  %221 = vmatpush.msra.mxu0 0.0
  %222 = vmatpush.msra.mxu0 0.0
  %223 = vmatpush.msra.mxu0 0.0
  %224 = vmatpush.msra.mxu0 0.0
  %225 = vmatpush.msra.mxu0 0.0
  %226 = vmatpush.msra.mxu0 0.0
  %227 = vmatpush.msra.mxu0 0.0
  %228 = vmatpush.msra.mxu0 0.0
  %229 = vmatpush.msra.mxu0 0.0
  %230 = vmatpush.msra.mxu0 0.0
  %231 = vmatpush.msra.mxu0 0.0
  %232 = vmatpush.msra.mxu0 %v30
  %233 = vmatpush.msra.mxu0 %v29
  %234 = vmatpush.msra.mxu0 %v28
  %235 = vmatpush.msra.mxu0 %v27
  %236 = vmatmul.f32.gmra.mxu0 %v218
  %v237 = vpop.f32.mrf.mxu0
  %v238 = vadd.f32 %v114, %v237
  %239 = vdwg.mxu0
  %s240 = scalar_lea.vmem [#allocation4], 8
  %241 = vst [vmem:[%s240] sm:$0xff] %v238
  %v242 = vld [vmem:[#allocation2] sm:$0xff]
  %v243 = vld [vmem:[#allocation3] sm:$0xff]
  %s244 = scalar_lea.vmem %s0, 16
  %v245 = vld [vmem:[%s244] sm:$0xff]
  %v247 = vsel %vm32, %v242, 0
  %249 = vmatpush.msra.mxu0 0.0
  %250 = vmatpush.msra.mxu0 0.0
  %251 = vmatpush.msra.mxu0 0.0
  %252 = vmatpush.msra.mxu0 0.0
  %253 = vmatpush.msra.mxu0 0.0
  %254 = vmatpush.msra.mxu0 0.0
  %255 = vmatpush.msra.mxu0 0.0
  %256 = vmatpush.msra.mxu0 0.0
  %257 = vmatpush.msra.mxu0 0.0
  %258 = vmatpush.msra.mxu0 0.0
  %259 = vmatpush.msra.mxu0 0.0
  %260 = vmatpush.msra.mxu0 0.0
  %261 = vmatpush.msra.mxu0 %v26
  %262 = vmatpush.msra.mxu0 %v25
  %263 = vmatpush.msra.mxu0 %v24
  %264 = vmatpush.msra.mxu0 %v23
  %265 = vmatmul.f32.gmra.mxu0 %v247
  %v266 = vpop.f32.mrf.mxu0
  %v267 = vadd.f32 0.0, %v266
  %268 = vdwg.mxu0
  %v269 = vadd.f32 %v245, %v267
  %v270 = vxor.u32 %v269, 2147483648
  %v271 = vmul.f32 %v270, 1.442695
  %v272 = vpow.pop %v271
  %v273 = vadd.f32 %v272, 1.0
  %v274 = vrcp.pop %v273
  %v275 = vmul.f32 %v273, %v274
  %v276 = vsub.f32 1.0, %v275
  %v277 = vmul.f32 %v274, %v276
  %v278 = vadd.f32 %v274, %v277
  %vm279 = vweird.f32 %v273
  %vm280 = vweird.f32 %v274
  %vm281 = vmor %vm279, %vm280
  %v282 = vsel %vm281, %v274, %v278
  %v283 = vand.u32 2147483647, %v273
  %vm284 = vcmp.eq.f32.partialorder %v283, 8.507059e+37
  %v285 = vand.u32 %v273, 2147483648
  %v286 = vor.u32 1.1754944e-38, %v285
  %v287 = vsel %vm284, %v286, %v282
  %v288 = vmul.f32 1.0, %v287
  %v289 = vtanh.pop %v269
  %291 = vrot.lane.b32.xlu0 %v243, 32
  %v292 = vpop.permute.xlu0 %291
  %v294 = vmul.f32 %v288, %v292
  %296 = vrot.lane.b32.xlu0 %v289, 64
  %v297 = vpop.permute.xlu0 %296
  %v299 = vmul.f32 %v288, %v297
  %301 = vrot.lane.b32.xlu0 %v299, 32
  %v302 = vpop.permute.xlu0 %301
  %v304 = vadd.f32 %v294, %v302
  %v305 = vtanh.pop %v304
  %307 = vrot.lane.b32.xlu0 %v305, 64
  %v308 = vpop.permute.xlu0 %307
  %v310 = vmul.f32 %v288, %v308
  %312 = vrot.lane.b32.xlu0 %v310, 32
  %v313 = vpop.permute.xlu0 %312
  %315 = vst.msk [vmem:[#allocation2] sm:$0xff] %vm32, %v313
  %317 = vrot.lane.b32.xlu0 %v304, 96
  %v318 = vpop.permute.xlu0 %317
  %320 = vst.msk [vmem:[#allocation3] sm:$0xff] %vm32, %v318
  %v321 = vsel %vm32, %v313, 0
  %323 = vmatpush.msra.mxu0 0.0
  %324 = vmatpush.msra.mxu0 0.0
  %325 = vmatpush.msra.mxu0 0.0
  %326 = vmatpush.msra.mxu0 0.0
  %327 = vmatpush.msra.mxu0 0.0
  %328 = vmatpush.msra.mxu0 0.0
  %329 = vmatpush.msra.mxu0 0.0
  %330 = vmatpush.msra.mxu0 0.0
  %331 = vmatpush.msra.mxu0 0.0
  %332 = vmatpush.msra.mxu0 0.0
  %333 = vmatpush.msra.mxu0 0.0
  %334 = vmatpush.msra.mxu0 0.0
  %335 = vmatpush.msra.mxu0 %v30
  %336 = vmatpush.msra.mxu0 %v29
  %337 = vmatpush.msra.mxu0 %v28
  %338 = vmatpush.msra.mxu0 %v27
  %339 = vmatmul.f32.gmra.mxu0 %v321
  %v340 = vpop.f32.mrf.mxu0
  %v341 = vadd.f32 %v114, %v340
  %342 = vdwg.mxu0
  %s343 = scalar_lea.vmem [#allocation4], 16
  %344 = vst [vmem:[%s343] sm:$0xff] %v341
  %v345 = vld [vmem:[#allocation2] sm:$0xff]
  %v346 = vld [vmem:[#allocation3] sm:$0xff]
  %s347 = scalar_lea.vmem %s0, 24
  %v348 = vld [vmem:[%s347] sm:$0xff]
  %v350 = vsel %vm32, %v345, 0
  %352 = vmatpush.msra.mxu0 0.0
  %353 = vmatpush.msra.mxu0 0.0
  %354 = vmatpush.msra.mxu0 0.0
  %355 = vmatpush.msra.mxu0 0.0
  %356 = vmatpush.msra.mxu0 0.0
  %357 = vmatpush.msra.mxu0 0.0
  %358 = vmatpush.msra.mxu0 0.0
  %359 = vmatpush.msra.mxu0 0.0
  %360 = vmatpush.msra.mxu0 0.0
  %361 = vmatpush.msra.mxu0 0.0
  %362 = vmatpush.msra.mxu0 0.0
  %363 = vmatpush.msra.mxu0 0.0
  %364 = vmatpush.msra.mxu0 %v26
  %365 = vmatpush.msra.mxu0 %v25
  %366 = vmatpush.msra.mxu0 %v24
  %367 = vmatpush.msra.mxu0 %v23
  %368 = vmatmul.f32.gmra.mxu0 %v350
  %v369 = vpop.f32.mrf.mxu0
  %v370 = vadd.f32 0.0, %v369
  %371 = vdwg.mxu0
  %v372 = vadd.f32 %v348, %v370
  %v373 = vxor.u32 %v372, 2147483648
  %v374 = vmul.f32 %v373, 1.442695
  %v375 = vpow.pop %v374
  %v376 = vadd.f32 %v375, 1.0
  %v377 = vrcp.pop %v376
  %v378 = vmul.f32 %v376, %v377
  %v379 = vsub.f32 1.0, %v378
  %v380 = vmul.f32 %v377, %v379
  %v381 = vadd.f32 %v377, %v380
  %vm382 = vweird.f32 %v376
  %vm383 = vweird.f32 %v377
  %vm384 = vmor %vm382, %vm383
  %v385 = vsel %vm384, %v377, %v381
  %v386 = vand.u32 2147483647, %v376
  %vm387 = vcmp.eq.f32.partialorder %v386, 8.507059e+37
  %v388 = vand.u32 %v376, 2147483648
  %v389 = vor.u32 1.1754944e-38, %v388
  %v390 = vsel %vm387, %v389, %v385
  %v391 = vmul.f32 1.0, %v390
  %v392 = vtanh.pop %v372
  %394 = vrot.lane.b32.xlu0 %v346, 32
  %v395 = vpop.permute.xlu0 %394
  %v397 = vmul.f32 %v391, %v395
  %399 = vrot.lane.b32.xlu0 %v392, 64
  %v400 = vpop.permute.xlu0 %399
  %v402 = vmul.f32 %v391, %v400
  %404 = vrot.lane.b32.xlu0 %v402, 32
  %v405 = vpop.permute.xlu0 %404
  %v407 = vadd.f32 %v397, %v405
  %v408 = vtanh.pop %v407
  %410 = vrot.lane.b32.xlu0 %v408, 64
  %v411 = vpop.permute.xlu0 %410
  %v413 = vmul.f32 %v391, %v411
  %415 = vrot.lane.b32.xlu0 %v413, 32
  %v416 = vpop.permute.xlu0 %415
  %418 = vst.msk [vmem:[#allocation2] sm:$0xff] %vm32, %v416
  %420 = vrot.lane.b32.xlu0 %v407, 96
  %v421 = vpop.permute.xlu0 %420
  %423 = vst.msk [vmem:[#allocation3] sm:$0xff] %vm32, %v421
  %v424 = vsel %vm32, %v416, 0
  %426 = vmatpush.msra.mxu0 0.0
  %427 = vmatpush.msra.mxu0 0.0
  %428 = vmatpush.msra.mxu0 0.0
  %429 = vmatpush.msra.mxu0 0.0
  %430 = vmatpush.msra.mxu0 0.0
  %431 = vmatpush.msra.mxu0 0.0
  %432 = vmatpush.msra.mxu0 0.0
  %433 = vmatpush.msra.mxu0 0.0
  %434 = vmatpush.msra.mxu0 0.0
  %435 = vmatpush.msra.mxu0 0.0
  %436 = vmatpush.msra.mxu0 0.0
  %437 = vmatpush.msra.mxu0 0.0
  %438 = vmatpush.msra.mxu0 %v30
  %439 = vmatpush.msra.mxu0 %v29
  %440 = vmatpush.msra.mxu0 %v28
  %441 = vmatpush.msra.mxu0 %v27
  %442 = vmatmul.f32.gmra.mxu0 %v424
  %v443 = vpop.f32.mrf.mxu0
  %v444 = vadd.f32 %v114, %v443
  %445 = vdwg.mxu0
  %s446 = scalar_lea.vmem [#allocation4], 24
  %447 = vst [vmem:[%s446] sm:$0xff] %v444
  %v448 = vld [vmem:[#allocation2] sm:$0xff]
  %v449 = vld [vmem:[#allocation3] sm:$0xff]
  %s450 = scalar_lea.vmem %s0, 32
  %v451 = vld [vmem:[%s450] sm:$0xff]
  %v453 = vsel %vm32, %v448, 0
  %455 = vmatpush.msra.mxu0 0.0
  %456 = vmatpush.msra.mxu0 0.0
  %457 = vmatpush.msra.mxu0 0.0
  %458 = vmatpush.msra.mxu0 0.0
  %459 = vmatpush.msra.mxu0 0.0
  %460 = vmatpush.msra.mxu0 0.0
  %461 = vmatpush.msra.mxu0 0.0
  %462 = vmatpush.msra.mxu0 0.0
  %463 = vmatpush.msra.mxu0 0.0
  %464 = vmatpush.msra.mxu0 0.0
  %465 = vmatpush.msra.mxu0 0.0
  %466 = vmatpush.msra.mxu0 0.0
  %467 = vmatpush.msra.mxu0 %v26
  %468 = vmatpush.msra.mxu0 %v25
  %469 = vmatpush.msra.mxu0 %v24
  %470 = vmatpush.msra.mxu0 %v23
  %471 = vmatmul.f32.gmra.mxu0 %v453
  %v472 = vpop.f32.mrf.mxu0
  %v473 = vadd.f32 0.0, %v472
  %474 = vdwg.mxu0
  %v475 = vadd.f32 %v451, %v473
  %v476 = vxor.u32 %v475, 2147483648
  %v477 = vmul.f32 %v476, 1.442695
  %v478 = vpow.pop %v477
  %v479 = vadd.f32 %v478, 1.0
  %v480 = vrcp.pop %v479
  %v481 = vmul.f32 %v479, %v480
  %v482 = vsub.f32 1.0, %v481
  %v483 = vmul.f32 %v480, %v482
  %v484 = vadd.f32 %v480, %v483
  %vm485 = vweird.f32 %v479
  %vm486 = vweird.f32 %v480
  %vm487 = vmor %vm485, %vm486
  %v488 = vsel %vm487, %v480, %v484
  %v489 = vand.u32 2147483647, %v479
  %vm490 = vcmp.eq.f32.partialorder %v489, 8.507059e+37
  %v491 = vand.u32 %v479, 2147483648
  %v492 = vor.u32 1.1754944e-38, %v491
  %v493 = vsel %vm490, %v492, %v488
  %v494 = vmul.f32 1.0, %v493
  %v495 = vtanh.pop %v475
  %497 = vrot.lane.b32.xlu0 %v449, 32
  %v498 = vpop.permute.xlu0 %497
  %v500 = vmul.f32 %v494, %v498
  %502 = vrot.lane.b32.xlu0 %v495, 64
  %v503 = vpop.permute.xlu0 %502
  %v505 = vmul.f32 %v494, %v503
  %507 = vrot.lane.b32.xlu0 %v505, 32
  %v508 = vpop.permute.xlu0 %507
  %v510 = vadd.f32 %v500, %v508
  %v511 = vtanh.pop %v510
  %513 = vrot.lane.b32.xlu0 %v511, 64
  %v514 = vpop.permute.xlu0 %513
  %v516 = vmul.f32 %v494, %v514
  %518 = vrot.lane.b32.xlu0 %v516, 32
  %v519 = vpop.permute.xlu0 %518
  %521 = vst.msk [vmem:[#allocation2] sm:$0xff] %vm32, %v519
  %523 = vrot.lane.b32.xlu0 %v510, 96
  %v524 = vpop.permute.xlu0 %523
  %526 = vst.msk [vmem:[#allocation3] sm:$0xff] %vm32, %v524
  %v527 = vsel %vm32, %v519, 0
  %529 = vmatpush.msra.mxu0 0.0
  %530 = vmatpush.msra.mxu0 0.0
  %531 = vmatpush.msra.mxu0 0.0
  %532 = vmatpush.msra.mxu0 0.0
  %533 = vmatpush.msra.mxu0 0.0
  %534 = vmatpush.msra.mxu0 0.0
  %535 = vmatpush.msra.mxu0 0.0
  %536 = vmatpush.msra.mxu0 0.0
  %537 = vmatpush.msra.mxu0 0.0
  %538 = vmatpush.msra.mxu0 0.0
  %539 = vmatpush.msra.mxu0 0.0
  %540 = vmatpush.msra.mxu0 0.0
  %541 = vmatpush.msra.mxu0 %v30
  %542 = vmatpush.msra.mxu0 %v29
  %543 = vmatpush.msra.mxu0 %v28
  %544 = vmatpush.msra.mxu0 %v27
  %545 = vmatmul.f32.gmra.mxu0 %v527
  %v546 = vpop.f32.mrf.mxu0
  %v547 = vadd.f32 %v114, %v546
  %548 = vdwg.mxu0
  %s549 = scalar_lea.vmem [#allocation4], 32
  %550 = vst [vmem:[%s549] sm:$0xff] %v547
  %v551 = vld [vmem:[#allocation2] sm:$0xff]
  %v552 = vld [vmem:[#allocation3] sm:$0xff]
  %s553 = scalar_lea.vmem %s0, 40
  %v554 = vld [vmem:[%s553] sm:$0xff]
  %v556 = vsel %vm32, %v551, 0
  %558 = vmatpush.msra.mxu0 0.0
  %559 = vmatpush.msra.mxu0 0.0
  %560 = vmatpush.msra.mxu0 0.0
  %561 = vmatpush.msra.mxu0 0.0
  %562 = vmatpush.msra.mxu0 0.0
  %563 = vmatpush.msra.mxu0 0.0
  %564 = vmatpush.msra.mxu0 0.0
  %565 = vmatpush.msra.mxu0 0.0
  %566 = vmatpush.msra.mxu0 0.0
  %567 = vmatpush.msra.mxu0 0.0
  %568 = vmatpush.msra.mxu0 0.0
  %569 = vmatpush.msra.mxu0 0.0
  %570 = vmatpush.msra.mxu0 %v26
  %571 = vmatpush.msra.mxu0 %v25
  %572 = vmatpush.msra.mxu0 %v24
  %573 = vmatpush.msra.mxu0 %v23
  %574 = vmatmul.f32.gmra.mxu0 %v556
  %v575 = vpop.f32.mrf.mxu0
  %v576 = vadd.f32 0.0, %v575
  %577 = vdwg.mxu0
  %v578 = vadd.f32 %v554, %v576
  %v579 = vxor.u32 %v578, 2147483648
  %v580 = vmul.f32 %v579, 1.442695
  %v581 = vpow.pop %v580
  %v582 = vadd.f32 %v581, 1.0
  %v583 = vrcp.pop %v582
  %v584 = vmul.f32 %v582, %v583
  %v585 = vsub.f32 1.0, %v584
  %v586 = vmul.f32 %v583, %v585
  %v587 = vadd.f32 %v583, %v586
  %vm588 = vweird.f32 %v582
  %vm589 = vweird.f32 %v583
  %vm590 = vmor %vm588, %vm589
  %v591 = vsel %vm590, %v583, %v587
  %v592 = vand.u32 2147483647, %v582
  %vm593 = vcmp.eq.f32.partialorder %v592, 8.507059e+37
  %v594 = vand.u32 %v582, 2147483648
  %v595 = vor.u32 1.1754944e-38, %v594
  %v596 = vsel %vm593, %v595, %v591
  %v597 = vmul.f32 1.0, %v596
  %v598 = vtanh.pop %v578
  %600 = vrot.lane.b32.xlu0 %v552, 32
  %v601 = vpop.permute.xlu0 %600
  %v603 = vmul.f32 %v597, %v601
  %605 = vrot.lane.b32.xlu0 %v598, 64
  %v606 = vpop.permute.xlu0 %605
  %v608 = vmul.f32 %v597, %v606
  %610 = vrot.lane.b32.xlu0 %v608, 32
  %v611 = vpop.permute.xlu0 %610
  %v613 = vadd.f32 %v603, %v611
  %v614 = vtanh.pop %v613
  %616 = vrot.lane.b32.xlu0 %v614, 64
  %v617 = vpop.permute.xlu0 %616
  %v619 = vmul.f32 %v597, %v617
  %621 = vrot.lane.b32.xlu0 %v619, 32
  %v622 = vpop.permute.xlu0 %621
  %624 = vst.msk [vmem:[#allocation2] sm:$0xff] %vm32, %v622
  %626 = vrot.lane.b32.xlu0 %v613, 96
  %v627 = vpop.permute.xlu0 %626
  %629 = vst.msk [vmem:[#allocation3] sm:$0xff] %vm32, %v627
  %v630 = vsel %vm32, %v622, 0
  %632 = vmatpush.msra.mxu0 0.0
  %633 = vmatpush.msra.mxu0 0.0
  %634 = vmatpush.msra.mxu0 0.0
  %635 = vmatpush.msra.mxu0 0.0
  %636 = vmatpush.msra.mxu0 0.0
  %637 = vmatpush.msra.mxu0 0.0
  %638 = vmatpush.msra.mxu0 0.0
  %639 = vmatpush.msra.mxu0 0.0
  %640 = vmatpush.msra.mxu0 0.0
  %641 = vmatpush.msra.mxu0 0.0
  %642 = vmatpush.msra.mxu0 0.0
  %643 = vmatpush.msra.mxu0 0.0
  %644 = vmatpush.msra.mxu0 %v30
  %645 = vmatpush.msra.mxu0 %v29
  %646 = vmatpush.msra.mxu0 %v28
  %647 = vmatpush.msra.mxu0 %v27
  %648 = vmatmul.f32.gmra.mxu0 %v630
  %v649 = vpop.f32.mrf.mxu0
  %v650 = vadd.f32 %v114, %v649
  %651 = vdwg.mxu0
  %s652 = scalar_lea.vmem [#allocation4], 40
  %653 = vst [vmem:[%s652] sm:$0xff] %v650
  %v654 = vld [vmem:[#allocation2] sm:$0xff]
  %v655 = vld [vmem:[#allocation3] sm:$0xff]
  %s656 = scalar_lea.vmem %s0, 48
  %v657 = vld [vmem:[%s656] sm:$0xff]
  %v659 = vsel %vm32, %v654, 0
  %661 = vmatpush.msra.mxu0 0.0
  %662 = vmatpush.msra.mxu0 0.0
  %663 = vmatpush.msra.mxu0 0.0
  %664 = vmatpush.msra.mxu0 0.0
  %665 = vmatpush.msra.mxu0 0.0
  %666 = vmatpush.msra.mxu0 0.0
  %667 = vmatpush.msra.mxu0 0.0
  %668 = vmatpush.msra.mxu0 0.0
  %669 = vmatpush.msra.mxu0 0.0
  %670 = vmatpush.msra.mxu0 0.0
  %671 = vmatpush.msra.mxu0 0.0
  %672 = vmatpush.msra.mxu0 0.0
  %673 = vmatpush.msra.mxu0 %v26
  %674 = vmatpush.msra.mxu0 %v25
  %675 = vmatpush.msra.mxu0 %v24
  %676 = vmatpush.msra.mxu0 %v23
  %677 = vmatmul.f32.gmra.mxu0 %v659
  %v678 = vpop.f32.mrf.mxu0
  %v679 = vadd.f32 0.0, %v678
  %680 = vdwg.mxu0
  %v681 = vadd.f32 %v657, %v679
  %v682 = vxor.u32 %v681, 2147483648
  %v683 = vmul.f32 %v682, 1.442695
  %v684 = vpow.pop %v683
  %v685 = vadd.f32 %v684, 1.0
  %v686 = vrcp.pop %v685
  %v687 = vmul.f32 %v685, %v686
  %v688 = vsub.f32 1.0, %v687
  %v689 = vmul.f32 %v686, %v688
  %v690 = vadd.f32 %v686, %v689
  %vm691 = vweird.f32 %v685
  %vm692 = vweird.f32 %v686
  %vm693 = vmor %vm691, %vm692
  %v694 = vsel %vm693, %v686, %v690
  %v695 = vand.u32 2147483647, %v685
  %vm696 = vcmp.eq.f32.partialorder %v695, 8.507059e+37
  %v697 = vand.u32 %v685, 2147483648
  %v698 = vor.u32 1.1754944e-38, %v697
  %v699 = vsel %vm696, %v698, %v694
  %v700 = vmul.f32 1.0, %v699
  %v701 = vtanh.pop %v681
  %703 = vrot.lane.b32.xlu0 %v655, 32
  %v704 = vpop.permute.xlu0 %703
  %v706 = vmul.f32 %v700, %v704
  %708 = vrot.lane.b32.xlu0 %v701, 64
  %v709 = vpop.permute.xlu0 %708
  %v711 = vmul.f32 %v700, %v709
  %713 = vrot.lane.b32.xlu0 %v711, 32
  %v714 = vpop.permute.xlu0 %713
  %v716 = vadd.f32 %v706, %v714
  %v717 = vtanh.pop %v716
  %719 = vrot.lane.b32.xlu0 %v717, 64
  %v720 = vpop.permute.xlu0 %719
  %v722 = vmul.f32 %v700, %v720
  %724 = vrot.lane.b32.xlu0 %v722, 32
  %v725 = vpop.permute.xlu0 %724
  %727 = vst.msk [vmem:[#allocation2] sm:$0xff] %vm32, %v725
  %729 = vrot.lane.b32.xlu0 %v716, 96
  %v730 = vpop.permute.xlu0 %729
  %732 = vst.msk [vmem:[#allocation3] sm:$0xff] %vm32, %v730
  %v733 = vsel %vm32, %v725, 0
  %735 = vmatpush.msra.mxu0 0.0
  %736 = vmatpush.msra.mxu0 0.0
  %737 = vmatpush.msra.mxu0 0.0
  %738 = vmatpush.msra.mxu0 0.0
  %739 = vmatpush.msra.mxu0 0.0
  %740 = vmatpush.msra.mxu0 0.0
  %741 = vmatpush.msra.mxu0 0.0
  %742 = vmatpush.msra.mxu0 0.0
  %743 = vmatpush.msra.mxu0 0.0
  %744 = vmatpush.msra.mxu0 0.0
  %745 = vmatpush.msra.mxu0 0.0
  %746 = vmatpush.msra.mxu0 0.0
  %747 = vmatpush.msra.mxu0 %v30
  %748 = vmatpush.msra.mxu0 %v29
  %749 = vmatpush.msra.mxu0 %v28
  %750 = vmatpush.msra.mxu0 %v27
  %751 = vmatmul.f32.gmra.mxu0 %v733
  %v752 = vpop.f32.mrf.mxu0
  %v753 = vadd.f32 %v114, %v752
  %754 = vdwg.mxu0
  %s755 = scalar_lea.vmem [#allocation4], 48
  %756 = vst [vmem:[%s755] sm:$0xff] %v753
  %v757 = vld [vmem:[#allocation2] sm:$0xff]
  %v758 = vld [vmem:[#allocation3] sm:$0xff]
  %s759 = scalar_lea.vmem %s0, 56
  %v760 = vld [vmem:[%s759] sm:$0xff]
  %v762 = vsel %vm32, %v757, 0
  %764 = vmatpush.msra.mxu0 0.0
  %765 = vmatpush.msra.mxu0 0.0
  %766 = vmatpush.msra.mxu0 0.0
  %767 = vmatpush.msra.mxu0 0.0
  %768 = vmatpush.msra.mxu0 0.0
  %769 = vmatpush.msra.mxu0 0.0
  %770 = vmatpush.msra.mxu0 0.0
  %771 = vmatpush.msra.mxu0 0.0
  %772 = vmatpush.msra.mxu0 0.0
  %773 = vmatpush.msra.mxu0 0.0
  %774 = vmatpush.msra.mxu0 0.0
  %775 = vmatpush.msra.mxu0 0.0
  %776 = vmatpush.msra.mxu0 %v26
  %777 = vmatpush.msra.mxu0 %v25
  %778 = vmatpush.msra.mxu0 %v24
  %779 = vmatpush.msra.mxu0 %v23
  %780 = vmatmul.f32.gmra.mxu0 %v762
  %v781 = vpop.f32.mrf.mxu0
  %v782 = vadd.f32 0.0, %v781
  %783 = vdwg.mxu0
  %v784 = vadd.f32 %v760, %v782
  %v785 = vxor.u32 %v784, 2147483648
  %v786 = vmul.f32 %v785, 1.442695
  %v787 = vpow.pop %v786
  %v788 = vadd.f32 %v787, 1.0
  %v789 = vrcp.pop %v788
  %v790 = vmul.f32 %v788, %v789
  %v791 = vsub.f32 1.0, %v790
  %v792 = vmul.f32 %v789, %v791
  %v793 = vadd.f32 %v789, %v792
  %vm794 = vweird.f32 %v788
  %vm795 = vweird.f32 %v789
  %vm796 = vmor %vm794, %vm795
  %v797 = vsel %vm796, %v789, %v793
  %v798 = vand.u32 2147483647, %v788
  %vm799 = vcmp.eq.f32.partialorder %v798, 8.507059e+37
  %v800 = vand.u32 %v788, 2147483648
  %v801 = vor.u32 1.1754944e-38, %v800
  %v802 = vsel %vm799, %v801, %v797
  %v803 = vmul.f32 1.0, %v802
  %v804 = vtanh.pop %v784
  %806 = vrot.lane.b32.xlu0 %v758, 32
  %v807 = vpop.permute.xlu0 %806
  %v809 = vmul.f32 %v803, %v807
  %811 = vrot.lane.b32.xlu0 %v804, 64
  %v812 = vpop.permute.xlu0 %811
  %v814 = vmul.f32 %v803, %v812
  %816 = vrot.lane.b32.xlu0 %v814, 32
  %v817 = vpop.permute.xlu0 %816
  %v819 = vadd.f32 %v809, %v817
  %v820 = vtanh.pop %v819
  %822 = vrot.lane.b32.xlu0 %v820, 64
  %v823 = vpop.permute.xlu0 %822
  %v825 = vmul.f32 %v803, %v823
  %827 = vrot.lane.b32.xlu0 %v825, 32
  %v828 = vpop.permute.xlu0 %827
  %830 = vst.msk [vmem:[#allocation2] sm:$0xff] %vm32, %v828
  %832 = vrot.lane.b32.xlu0 %v819, 96
  %v833 = vpop.permute.xlu0 %832
  %835 = vst.msk [vmem:[#allocation3] sm:$0xff] %vm32, %v833
  %v836 = vsel %vm32, %v828, 0
  %838 = vmatpush.msra.mxu0 0.0
  %839 = vmatpush.msra.mxu0 0.0
  %840 = vmatpush.msra.mxu0 0.0
  %841 = vmatpush.msra.mxu0 0.0
  %842 = vmatpush.msra.mxu0 0.0
  %843 = vmatpush.msra.mxu0 0.0
  %844 = vmatpush.msra.mxu0 0.0
  %845 = vmatpush.msra.mxu0 0.0
  %846 = vmatpush.msra.mxu0 0.0
  %847 = vmatpush.msra.mxu0 0.0
  %848 = vmatpush.msra.mxu0 0.0
  %849 = vmatpush.msra.mxu0 0.0
  %850 = vmatpush.msra.mxu0 %v30
  %851 = vmatpush.msra.mxu0 %v29
  %852 = vmatpush.msra.mxu0 %v28
  %853 = vmatpush.msra.mxu0 %v27
  %854 = vmatmul.f32.gmra.mxu0 %v836
  %v855 = vpop.f32.mrf.mxu0
  %v856 = vadd.f32 %v114, %v855
  %857 = vdwg.mxu0
  %s858 = scalar_lea.vmem [#allocation4], 56
  %859 = vst [vmem:[%s858] sm:$0xff] %v856
  %v860 = vld [vmem:[#allocation2] sm:$0xff]
  %861 = vst.msk [vmem:[%s6] sm:$0xff] %vm32, %v860
  %v862 = vld [vmem:[#allocation3] sm:$0xff]
  %863 = vst.msk [vmem:[%s7] sm:$0xff] %vm32, %v862
  %v864 = vld [vmem:[%s2] sm:$0xff]
  %v865 = vld [vmem:[%s2 + $0x8] sm:$0xff]
  %v866 = vld [vmem:[%s2 + $0x10] sm:$0xff]
  %v867 = vld [vmem:[%s2 + $0x18] sm:$0xff]
  %868 = vst.msk [vmem:[#allocation2] sm:$0xff] %vm32, 0.0
  %869 = vst.msk [vmem:[#allocation3] sm:$0xff] %vm32, 0.0
  %v870 = vld [vmem:[#allocation2] sm:$0xff]
  %v871 = vld [vmem:[#allocation3] sm:$0xff]
  %v872 = vld [vmem:[#allocation4] sm:$0xff]
  %v874 = vsel %vm32, %v870, 0
  %876 = vmatpush.msra.mxu0 0.0
  %877 = vmatpush.msra.mxu0 0.0
  %878 = vmatpush.msra.mxu0 0.0
  %879 = vmatpush.msra.mxu0 0.0
  %880 = vmatpush.msra.mxu0 0.0
  %881 = vmatpush.msra.mxu0 0.0
  %882 = vmatpush.msra.mxu0 0.0
  %883 = vmatpush.msra.mxu0 0.0
  %884 = vmatpush.msra.mxu0 0.0
  %885 = vmatpush.msra.mxu0 0.0
  %886 = vmatpush.msra.mxu0 0.0
  %887 = vmatpush.msra.mxu0 0.0
  %888 = vmatpush.msra.mxu0 %v867
  %889 = vmatpush.msra.mxu0 %v866
  %890 = vmatpush.msra.mxu0 %v865
  %891 = vmatpush.msra.mxu0 %v864
  %892 = vmatmul.f32.gmra.mxu0 %v874
  %v893 = vpop.f32.mrf.mxu0
  %v894 = vadd.f32 0.0, %v893
  %895 = vdwg.mxu0
  %v896 = vadd.f32 %v872, %v894
  %v897 = vxor.u32 %v896, 2147483648
  %v898 = vmul.f32 %v897, 1.442695
  %v899 = vpow.pop %v898
  %v900 = vadd.f32 %v899, 1.0
  %v901 = vrcp.pop %v900
  %v902 = vmul.f32 %v900, %v901
  %v903 = vsub.f32 1.0, %v902
  %v904 = vmul.f32 %v901, %v903
  %v905 = vadd.f32 %v901, %v904
  %vm906 = vweird.f32 %v900
  %vm907 = vweird.f32 %v901
  %vm908 = vmor %vm906, %vm907
  %v909 = vsel %vm908, %v901, %v905
  %v910 = vand.u32 2147483647, %v900
  %vm911 = vcmp.eq.f32.partialorder %v910, 8.507059e+37
  %v912 = vand.u32 %v900, 2147483648
  %v913 = vor.u32 1.1754944e-38, %v912
  %v914 = vsel %vm911, %v913, %v909
  %v915 = vmul.f32 1.0, %v914
  %v916 = vtanh.pop %v896
  %918 = vrot.lane.b32.xlu0 %v871, 32
  %v919 = vpop.permute.xlu0 %918
  %v921 = vmul.f32 %v915, %v919
  %923 = vrot.lane.b32.xlu0 %v916, 64
  %v924 = vpop.permute.xlu0 %923
  %v926 = vmul.f32 %v915, %v924
  %928 = vrot.lane.b32.xlu0 %v926, 32
  %v929 = vpop.permute.xlu0 %928
  %v931 = vadd.f32 %v921, %v929
  %v932 = vtanh.pop %v931
  %934 = vrot.lane.b32.xlu0 %v932, 64
  %v935 = vpop.permute.xlu0 %934
  %v937 = vmul.f32 %v915, %v935
  %939 = vrot.lane.b32.xlu0 %v937, 32
  %v940 = vpop.permute.xlu0 %939
  %942 = vst.msk [vmem:[#allocation2] sm:$0xff] %vm32, %v940
  %944 = vrot.lane.b32.xlu0 %v931, 96
  %v945 = vpop.permute.xlu0 %944
  %947 = vst.msk [vmem:[#allocation3] sm:$0xff] %vm32, %v945
  %948 = vst.msk [vmem:[%s5] sm:$0xff] %vm32, %v940
  %v949 = vld [vmem:[#allocation2] sm:$0xff]
  %v950 = vld [vmem:[#allocation3] sm:$0xff]
  %v951 = vld [vmem:[%s240] sm:$0xff]
  %v953 = vsel %vm32, %v949, 0
  %955 = vmatpush.msra.mxu0 0.0
  %956 = vmatpush.msra.mxu0 0.0
  %957 = vmatpush.msra.mxu0 0.0
  %958 = vmatpush.msra.mxu0 0.0
  %959 = vmatpush.msra.mxu0 0.0
  %960 = vmatpush.msra.mxu0 0.0
  %961 = vmatpush.msra.mxu0 0.0
  %962 = vmatpush.msra.mxu0 0.0
  %963 = vmatpush.msra.mxu0 0.0
  %964 = vmatpush.msra.mxu0 0.0
  %965 = vmatpush.msra.mxu0 0.0
  %966 = vmatpush.msra.mxu0 0.0
  %967 = vmatpush.msra.mxu0 %v867
  %968 = vmatpush.msra.mxu0 %v866
  %969 = vmatpush.msra.mxu0 %v865
  %970 = vmatpush.msra.mxu0 %v864
  %971 = vmatmul.f32.gmra.mxu0 %v953
  %v972 = vpop.f32.mrf.mxu0
  %v973 = vadd.f32 0.0, %v972
  %974 = vdwg.mxu0
  %v975 = vadd.f32 %v951, %v973
  %v976 = vxor.u32 %v975, 2147483648
  %v977 = vmul.f32 %v976, 1.442695
  %v978 = vpow.pop %v977
  %v979 = vadd.f32 %v978, 1.0
  %v980 = vrcp.pop %v979
  %v981 = vmul.f32 %v979, %v980
  %v982 = vsub.f32 1.0, %v981
  %v983 = vmul.f32 %v980, %v982
  %v984 = vadd.f32 %v980, %v983
  %vm985 = vweird.f32 %v979
  %vm986 = vweird.f32 %v980
  %vm987 = vmor %vm985, %vm986
  %v988 = vsel %vm987, %v980, %v984
  %v989 = vand.u32 2147483647, %v979
  %vm990 = vcmp.eq.f32.partialorder %v989, 8.507059e+37
  %v991 = vand.u32 %v979, 2147483648
  %v992 = vor.u32 1.1754944e-38, %v991
  %v993 = vsel %vm990, %v992, %v988
  %v994 = vmul.f32 1.0, %v993
  %v995 = vtanh.pop %v975
  %997 = vrot.lane.b32.xlu0 %v950, 32
  %v998 = vpop.permute.xlu0 %997
  %v1000 = vmul.f32 %v994, %v998
  %1002 = vrot.lane.b32.xlu0 %v995, 64
  %v1003 = vpop.permute.xlu0 %1002
  %v1005 = vmul.f32 %v994, %v1003
  %1007 = vrot.lane.b32.xlu0 %v1005, 32
  %v1008 = vpop.permute.xlu0 %1007
  %v1010 = vadd.f32 %v1000, %v1008
  %v1011 = vtanh.pop %v1010
  %1013 = vrot.lane.b32.xlu0 %v1011, 64
  %v1014 = vpop.permute.xlu0 %1013
  %v1016 = vmul.f32 %v994, %v1014
  %1018 = vrot.lane.b32.xlu0 %v1016, 32
  %v1019 = vpop.permute.xlu0 %1018
  %1021 = vst.msk [vmem:[#allocation2] sm:$0xff] %vm32, %v1019
  %1023 = vrot.lane.b32.xlu0 %v1010, 96
  %v1024 = vpop.permute.xlu0 %1023
  %1026 = vst.msk [vmem:[#allocation3] sm:$0xff] %vm32, %v1024
  %s1027 = scalar_lea.vmem %s5, 8
  %1028 = vst.msk [vmem:[%s1027] sm:$0xff] %vm32, %v1019
  %v1029 = vld [vmem:[#allocation2] sm:$0xff]
  %v1030 = vld [vmem:[#allocation3] sm:$0xff]
  %v1031 = vld [vmem:[%s343] sm:$0xff]
  %v1033 = vsel %vm32, %v1029, 0
  %1035 = vmatpush.msra.mxu0 0.0
  %1036 = vmatpush.msra.mxu0 0.0
  %1037 = vmatpush.msra.mxu0 0.0
  %1038 = vmatpush.msra.mxu0 0.0
  %1039 = vmatpush.msra.mxu0 0.0
  %1040 = vmatpush.msra.mxu0 0.0
  %1041 = vmatpush.msra.mxu0 0.0
  %1042 = vmatpush.msra.mxu0 0.0
  %1043 = vmatpush.msra.mxu0 0.0
  %1044 = vmatpush.msra.mxu0 0.0
  %1045 = vmatpush.msra.mxu0 0.0
  %1046 = vmatpush.msra.mxu0 0.0
  %1047 = vmatpush.msra.mxu0 %v867
  %1048 = vmatpush.msra.mxu0 %v866
  %1049 = vmatpush.msra.mxu0 %v865
  %1050 = vmatpush.msra.mxu0 %v864
  %1051 = vmatmul.f32.gmra.mxu0 %v1033
  %v1052 = vpop.f32.mrf.mxu0
  %v1053 = vadd.f32 0.0, %v1052
  %1054 = vdwg.mxu0
  %v1055 = vadd.f32 %v1031, %v1053
  %v1056 = vxor.u32 %v1055, 2147483648
  %v1057 = vmul.f32 %v1056, 1.442695
  %v1058 = vpow.pop %v1057
  %v1059 = vadd.f32 %v1058, 1.0
  %v1060 = vrcp.pop %v1059
  %v1061 = vmul.f32 %v1059, %v1060
  %v1062 = vsub.f32 1.0, %v1061
  %v1063 = vmul.f32 %v1060, %v1062
  %v1064 = vadd.f32 %v1060, %v1063
  %vm1065 = vweird.f32 %v1059
  %vm1066 = vweird.f32 %v1060
  %vm1067 = vmor %vm1065, %vm1066
  %v1068 = vsel %vm1067, %v1060, %v1064
  %v1069 = vand.u32 2147483647, %v1059
  %vm1070 = vcmp.eq.f32.partialorder %v1069, 8.507059e+37
  %v1071 = vand.u32 %v1059, 2147483648
  %v1072 = vor.u32 1.1754944e-38, %v1071
  %v1073 = vsel %vm1070, %v1072, %v1068
  %v1074 = vmul.f32 1.0, %v1073
  %v1075 = vtanh.pop %v1055
  %1077 = vrot.lane.b32.xlu0 %v1030, 32
  %v1078 = vpop.permute.xlu0 %1077
  %v1080 = vmul.f32 %v1074, %v1078
  %1082 = vrot.lane.b32.xlu0 %v1075, 64
  %v1083 = vpop.permute.xlu0 %1082
  %v1085 = vmul.f32 %v1074, %v1083
  %1087 = vrot.lane.b32.xlu0 %v1085, 32
  %v1088 = vpop.permute.xlu0 %1087
  %v1090 = vadd.f32 %v1080, %v1088
  %v1091 = vtanh.pop %v1090
  %1093 = vrot.lane.b32.xlu0 %v1091, 64
  %v1094 = vpop.permute.xlu0 %1093
  %v1096 = vmul.f32 %v1074, %v1094
  %1098 = vrot.lane.b32.xlu0 %v1096, 32
  %v1099 = vpop.permute.xlu0 %1098
  %1101 = vst.msk [vmem:[#allocation2] sm:$0xff] %vm32, %v1099
  %1103 = vrot.lane.b32.xlu0 %v1090, 96
  %v1104 = vpop.permute.xlu0 %1103
  %1106 = vst.msk [vmem:[#allocation3] sm:$0xff] %vm32, %v1104
  %s1107 = scalar_lea.vmem %s5, 16
  %1108 = vst.msk [vmem:[%s1107] sm:$0xff] %vm32, %v1099
  %v1109 = vld [vmem:[#allocation2] sm:$0xff]
  %v1110 = vld [vmem:[#allocation3] sm:$0xff]
  %v1111 = vld [vmem:[%s446] sm:$0xff]
  %v1113 = vsel %vm32, %v1109, 0
  %1115 = vmatpush.msra.mxu0 0.0
  %1116 = vmatpush.msra.mxu0 0.0
  %1117 = vmatpush.msra.mxu0 0.0
  %1118 = vmatpush.msra.mxu0 0.0
  %1119 = vmatpush.msra.mxu0 0.0
  %1120 = vmatpush.msra.mxu0 0.0
  %1121 = vmatpush.msra.mxu0 0.0
  %1122 = vmatpush.msra.mxu0 0.0
  %1123 = vmatpush.msra.mxu0 0.0
  %1124 = vmatpush.msra.mxu0 0.0
  %1125 = vmatpush.msra.mxu0 0.0
  %1126 = vmatpush.msra.mxu0 0.0
  %1127 = vmatpush.msra.mxu0 %v867
  %1128 = vmatpush.msra.mxu0 %v866
  %1129 = vmatpush.msra.mxu0 %v865
  %1130 = vmatpush.msra.mxu0 %v864
  %1131 = vmatmul.f32.gmra.mxu0 %v1113
  %v1132 = vpop.f32.mrf.mxu0
  %v1133 = vadd.f32 0.0, %v1132
  %1134 = vdwg.mxu0
  %v1135 = vadd.f32 %v1111, %v1133
  %v1136 = vxor.u32 %v1135, 2147483648
  %v1137 = vmul.f32 %v1136, 1.442695
  %v1138 = vpow.pop %v1137
  %v1139 = vadd.f32 %v1138, 1.0
  %v1140 = vrcp.pop %v1139
  %v1141 = vmul.f32 %v1139, %v1140
  %v1142 = vsub.f32 1.0, %v1141
  %v1143 = vmul.f32 %v1140, %v1142
  %v1144 = vadd.f32 %v1140, %v1143
  %vm1145 = vweird.f32 %v1139
  %vm1146 = vweird.f32 %v1140
  %vm1147 = vmor %vm1145, %vm1146
  %v1148 = vsel %vm1147, %v1140, %v1144
  %v1149 = vand.u32 2147483647, %v1139
  %vm1150 = vcmp.eq.f32.partialorder %v1149, 8.507059e+37
  %v1151 = vand.u32 %v1139, 2147483648
  %v1152 = vor.u32 1.1754944e-38, %v1151
  %v1153 = vsel %vm1150, %v1152, %v1148
  %v1154 = vmul.f32 1.0, %v1153
  %v1155 = vtanh.pop %v1135
  %1157 = vrot.lane.b32.xlu0 %v1110, 32
  %v1158 = vpop.permute.xlu0 %1157
  %v1160 = vmul.f32 %v1154, %v1158
  %1162 = vrot.lane.b32.xlu0 %v1155, 64
  %v1163 = vpop.permute.xlu0 %1162
  %v1165 = vmul.f32 %v1154, %v1163
  %1167 = vrot.lane.b32.xlu0 %v1165, 32
  %v1168 = vpop.permute.xlu0 %1167
  %v1170 = vadd.f32 %v1160, %v1168
  %v1171 = vtanh.pop %v1170
  %1173 = vrot.lane.b32.xlu0 %v1171, 64
  %v1174 = vpop.permute.xlu0 %1173
  %v1176 = vmul.f32 %v1154, %v1174
  %1178 = vrot.lane.b32.xlu0 %v1176, 32
  %v1179 = vpop.permute.xlu0 %1178
  %1181 = vst.msk [vmem:[#allocation2] sm:$0xff] %vm32, %v1179
  %1183 = vrot.lane.b32.xlu0 %v1170, 96
  %v1184 = vpop.permute.xlu0 %1183
  %1186 = vst.msk [vmem:[#allocation3] sm:$0xff] %vm32, %v1184
  %s1187 = scalar_lea.vmem %s5, 24
  %1188 = vst.msk [vmem:[%s1187] sm:$0xff] %vm32, %v1179
  %v1189 = vld [vmem:[#allocation2] sm:$0xff]
  %v1190 = vld [vmem:[#allocation3] sm:$0xff]
  %v1191 = vld [vmem:[%s549] sm:$0xff]
  %v1193 = vsel %vm32, %v1189, 0
  %1195 = vmatpush.msra.mxu0 0.0
  %1196 = vmatpush.msra.mxu0 0.0
  %1197 = vmatpush.msra.mxu0 0.0
  %1198 = vmatpush.msra.mxu0 0.0
  %1199 = vmatpush.msra.mxu0 0.0
  %1200 = vmatpush.msra.mxu0 0.0
  %1201 = vmatpush.msra.mxu0 0.0
  %1202 = vmatpush.msra.mxu0 0.0
  %1203 = vmatpush.msra.mxu0 0.0
  %1204 = vmatpush.msra.mxu0 0.0
  %1205 = vmatpush.msra.mxu0 0.0
  %1206 = vmatpush.msra.mxu0 0.0
  %1207 = vmatpush.msra.mxu0 %v867
  %1208 = vmatpush.msra.mxu0 %v866
  %1209 = vmatpush.msra.mxu0 %v865
  %1210 = vmatpush.msra.mxu0 %v864
  %1211 = vmatmul.f32.gmra.mxu0 %v1193
  %v1212 = vpop.f32.mrf.mxu0
  %v1213 = vadd.f32 0.0, %v1212
  %1214 = vdwg.mxu0
  %v1215 = vadd.f32 %v1191, %v1213
  %v1216 = vxor.u32 %v1215, 2147483648
  %v1217 = vmul.f32 %v1216, 1.442695
  %v1218 = vpow.pop %v1217
  %v1219 = vadd.f32 %v1218, 1.0
  %v1220 = vrcp.pop %v1219
  %v1221 = vmul.f32 %v1219, %v1220
  %v1222 = vsub.f32 1.0, %v1221
  %v1223 = vmul.f32 %v1220, %v1222
  %v1224 = vadd.f32 %v1220, %v1223
  %vm1225 = vweird.f32 %v1219
  %vm1226 = vweird.f32 %v1220
  %vm1227 = vmor %vm1225, %vm1226
  %v1228 = vsel %vm1227, %v1220, %v1224
  %v1229 = vand.u32 2147483647, %v1219
  %vm1230 = vcmp.eq.f32.partialorder %v1229, 8.507059e+37
  %v1231 = vand.u32 %v1219, 2147483648
  %v1232 = vor.u32 1.1754944e-38, %v1231
  %v1233 = vsel %vm1230, %v1232, %v1228
  %v1234 = vmul.f32 1.0, %v1233
  %v1235 = vtanh.pop %v1215
  %1237 = vrot.lane.b32.xlu0 %v1190, 32
  %v1238 = vpop.permute.xlu0 %1237
  %v1240 = vmul.f32 %v1234, %v1238
  %1242 = vrot.lane.b32.xlu0 %v1235, 64
  %v1243 = vpop.permute.xlu0 %1242
  %v1245 = vmul.f32 %v1234, %v1243
  %1247 = vrot.lane.b32.xlu0 %v1245, 32
  %v1248 = vpop.permute.xlu0 %1247
  %v1250 = vadd.f32 %v1240, %v1248
  %v1251 = vtanh.pop %v1250
  %1253 = vrot.lane.b32.xlu0 %v1251, 64
  %v1254 = vpop.permute.xlu0 %1253
  %v1256 = vmul.f32 %v1234, %v1254
  %1258 = vrot.lane.b32.xlu0 %v1256, 32
  %v1259 = vpop.permute.xlu0 %1258
  %1261 = vst.msk [vmem:[#allocation2] sm:$0xff] %vm32, %v1259
  %1263 = vrot.lane.b32.xlu0 %v1250, 96
  %v1264 = vpop.permute.xlu0 %1263
  %1266 = vst.msk [vmem:[#allocation3] sm:$0xff] %vm32, %v1264
  %s1267 = scalar_lea.vmem %s5, 32
  %1268 = vst.msk [vmem:[%s1267] sm:$0xff] %vm32, %v1259
  %v1269 = vld [vmem:[#allocation2] sm:$0xff]
  %v1270 = vld [vmem:[#allocation3] sm:$0xff]
  %v1271 = vld [vmem:[%s652] sm:$0xff]
  %v1273 = vsel %vm32, %v1269, 0
  %1275 = vmatpush.msra.mxu0 0.0
  %1276 = vmatpush.msra.mxu0 0.0
  %1277 = vmatpush.msra.mxu0 0.0
  %1278 = vmatpush.msra.mxu0 0.0
  %1279 = vmatpush.msra.mxu0 0.0
  %1280 = vmatpush.msra.mxu0 0.0
  %1281 = vmatpush.msra.mxu0 0.0
  %1282 = vmatpush.msra.mxu0 0.0
  %1283 = vmatpush.msra.mxu0 0.0
  %1284 = vmatpush.msra.mxu0 0.0
  %1285 = vmatpush.msra.mxu0 0.0
  %1286 = vmatpush.msra.mxu0 0.0
  %1287 = vmatpush.msra.mxu0 %v867
  %1288 = vmatpush.msra.mxu0 %v866
  %1289 = vmatpush.msra.mxu0 %v865
  %1290 = vmatpush.msra.mxu0 %v864
  %1291 = vmatmul.f32.gmra.mxu0 %v1273
  %v1292 = vpop.f32.mrf.mxu0
  %v1293 = vadd.f32 0.0, %v1292
  %1294 = vdwg.mxu0
  %v1295 = vadd.f32 %v1271, %v1293
  %v1296 = vxor.u32 %v1295, 2147483648
  %v1297 = vmul.f32 %v1296, 1.442695
  %v1298 = vpow.pop %v1297
  %v1299 = vadd.f32 %v1298, 1.0
  %v1300 = vrcp.pop %v1299
  %v1301 = vmul.f32 %v1299, %v1300
  %v1302 = vsub.f32 1.0, %v1301
  %v1303 = vmul.f32 %v1300, %v1302
  %v1304 = vadd.f32 %v1300, %v1303
  %vm1305 = vweird.f32 %v1299
  %vm1306 = vweird.f32 %v1300
  %vm1307 = vmor %vm1305, %vm1306
  %v1308 = vsel %vm1307, %v1300, %v1304
  %v1309 = vand.u32 2147483647, %v1299
  %vm1310 = vcmp.eq.f32.partialorder %v1309, 8.507059e+37
  %v1311 = vand.u32 %v1299, 2147483648
  %v1312 = vor.u32 1.1754944e-38, %v1311
  %v1313 = vsel %vm1310, %v1312, %v1308
  %v1314 = vmul.f32 1.0, %v1313
  %v1315 = vtanh.pop %v1295
  %1317 = vrot.lane.b32.xlu0 %v1270, 32
  %v1318 = vpop.permute.xlu0 %1317
  %v1320 = vmul.f32 %v1314, %v1318
  %1322 = vrot.lane.b32.xlu0 %v1315, 64
  %v1323 = vpop.permute.xlu0 %1322
  %v1325 = vmul.f32 %v1314, %v1323
  %1327 = vrot.lane.b32.xlu0 %v1325, 32
  %v1328 = vpop.permute.xlu0 %1327
  %v1330 = vadd.f32 %v1320, %v1328
  %v1331 = vtanh.pop %v1330
  %1333 = vrot.lane.b32.xlu0 %v1331, 64
  %v1334 = vpop.permute.xlu0 %1333
  %v1336 = vmul.f32 %v1314, %v1334
  %1338 = vrot.lane.b32.xlu0 %v1336, 32
  %v1339 = vpop.permute.xlu0 %1338
  %1341 = vst.msk [vmem:[#allocation2] sm:$0xff] %vm32, %v1339
  %1343 = vrot.lane.b32.xlu0 %v1330, 96
  %v1344 = vpop.permute.xlu0 %1343
  %1346 = vst.msk [vmem:[#allocation3] sm:$0xff] %vm32, %v1344
  %s1347 = scalar_lea.vmem %s5, 40
  %1348 = vst.msk [vmem:[%s1347] sm:$0xff] %vm32, %v1339
  %v1349 = vld [vmem:[#allocation2] sm:$0xff]
  %v1350 = vld [vmem:[#allocation3] sm:$0xff]
  %v1351 = vld [vmem:[%s755] sm:$0xff]
  %v1353 = vsel %vm32, %v1349, 0
  %1355 = vmatpush.msra.mxu0 0.0
  %1356 = vmatpush.msra.mxu0 0.0
  %1357 = vmatpush.msra.mxu0 0.0
  %1358 = vmatpush.msra.mxu0 0.0
  %1359 = vmatpush.msra.mxu0 0.0
  %1360 = vmatpush.msra.mxu0 0.0
  %1361 = vmatpush.msra.mxu0 0.0
  %1362 = vmatpush.msra.mxu0 0.0
  %1363 = vmatpush.msra.mxu0 0.0
  %1364 = vmatpush.msra.mxu0 0.0
  %1365 = vmatpush.msra.mxu0 0.0
  %1366 = vmatpush.msra.mxu0 0.0
  %1367 = vmatpush.msra.mxu0 %v867
  %1368 = vmatpush.msra.mxu0 %v866
  %1369 = vmatpush.msra.mxu0 %v865
  %1370 = vmatpush.msra.mxu0 %v864
  %1371 = vmatmul.f32.gmra.mxu0 %v1353
  %v1372 = vpop.f32.mrf.mxu0
  %v1373 = vadd.f32 0.0, %v1372
  %1374 = vdwg.mxu0
  %v1375 = vadd.f32 %v1351, %v1373
  %v1376 = vxor.u32 %v1375, 2147483648
  %v1377 = vmul.f32 %v1376, 1.442695
  %v1378 = vpow.pop %v1377
  %v1379 = vadd.f32 %v1378, 1.0
  %v1380 = vrcp.pop %v1379
  %v1381 = vmul.f32 %v1379, %v1380
  %v1382 = vsub.f32 1.0, %v1381
  %v1383 = vmul.f32 %v1380, %v1382
  %v1384 = vadd.f32 %v1380, %v1383
  %vm1385 = vweird.f32 %v1379
  %vm1386 = vweird.f32 %v1380
  %vm1387 = vmor %vm1385, %vm1386
  %v1388 = vsel %vm1387, %v1380, %v1384
  %v1389 = vand.u32 2147483647, %v1379
  %vm1390 = vcmp.eq.f32.partialorder %v1389, 8.507059e+37
  %v1391 = vand.u32 %v1379, 2147483648
  %v1392 = vor.u32 1.1754944e-38, %v1391
  %v1393 = vsel %vm1390, %v1392, %v1388
  %v1394 = vmul.f32 1.0, %v1393
  %v1395 = vtanh.pop %v1375
  %1397 = vrot.lane.b32.xlu0 %v1350, 32
  %v1398 = vpop.permute.xlu0 %1397
  %v1400 = vmul.f32 %v1394, %v1398
  %1402 = vrot.lane.b32.xlu0 %v1395, 64
  %v1403 = vpop.permute.xlu0 %1402
  %v1405 = vmul.f32 %v1394, %v1403
  %1407 = vrot.lane.b32.xlu0 %v1405, 32
  %v1408 = vpop.permute.xlu0 %1407
  %v1410 = vadd.f32 %v1400, %v1408
  %v1411 = vtanh.pop %v1410
  %1413 = vrot.lane.b32.xlu0 %v1411, 64
  %v1414 = vpop.permute.xlu0 %1413
  %v1416 = vmul.f32 %v1394, %v1414
  %1418 = vrot.lane.b32.xlu0 %v1416, 32
  %v1419 = vpop.permute.xlu0 %1418
  %1421 = vst.msk [vmem:[#allocation2] sm:$0xff] %vm32, %v1419
  %1423 = vrot.lane.b32.xlu0 %v1410, 96
  %v1424 = vpop.permute.xlu0 %1423
  %1426 = vst.msk [vmem:[#allocation3] sm:$0xff] %vm32, %v1424
  %s1427 = scalar_lea.vmem %s5, 48
  %1428 = vst.msk [vmem:[%s1427] sm:$0xff] %vm32, %v1419
  %v1429 = vld [vmem:[#allocation2] sm:$0xff]
  %v1430 = vld [vmem:[#allocation3] sm:$0xff]
  %v1431 = vld [vmem:[%s858] sm:$0xff]
  %v1433 = vsel %vm32, %v1429, 0
  %1435 = vmatpush.msra.mxu0 0.0
  %1436 = vmatpush.msra.mxu0 0.0
  %1437 = vmatpush.msra.mxu0 0.0
  %1438 = vmatpush.msra.mxu0 0.0
  %1439 = vmatpush.msra.mxu0 0.0
  %1440 = vmatpush.msra.mxu0 0.0
  %1441 = vmatpush.msra.mxu0 0.0
  %1442 = vmatpush.msra.mxu0 0.0
  %1443 = vmatpush.msra.mxu0 0.0
  %1444 = vmatpush.msra.mxu0 0.0
  %1445 = vmatpush.msra.mxu0 0.0
  %1446 = vmatpush.msra.mxu0 0.0
  %1447 = vmatpush.msra.mxu0 %v867
  %1448 = vmatpush.msra.mxu0 %v866
  %1449 = vmatpush.msra.mxu0 %v865
  %1450 = vmatpush.msra.mxu0 %v864
  %1451 = vmatmul.f32.gmra.mxu0 %v1433
  %v1452 = vpop.f32.mrf.mxu0
  %v1453 = vadd.f32 0.0, %v1452
  %1454 = vdwg.mxu0
  %v1455 = vadd.f32 %v1431, %v1453
  %v1456 = vxor.u32 %v1455, 2147483648
  %v1457 = vmul.f32 %v1456, 1.442695
  %v1458 = vpow.pop %v1457
  %v1459 = vadd.f32 %v1458, 1.0
  %v1460 = vrcp.pop %v1459
  %v1461 = vmul.f32 %v1459, %v1460
  %v1462 = vsub.f32 1.0, %v1461
  %v1463 = vmul.f32 %v1460, %v1462
  %v1464 = vadd.f32 %v1460, %v1463
  %vm1465 = vweird.f32 %v1459
  %vm1466 = vweird.f32 %v1460
  %vm1467 = vmor %vm1465, %vm1466
  %v1468 = vsel %vm1467, %v1460, %v1464
  %v1469 = vand.u32 2147483647, %v1459
  %vm1470 = vcmp.eq.f32.partialorder %v1469, 8.507059e+37
  %v1471 = vand.u32 %v1459, 2147483648
  %v1472 = vor.u32 1.1754944e-38, %v1471
  %v1473 = vsel %vm1470, %v1472, %v1468
  %v1474 = vmul.f32 1.0, %v1473
  %v1475 = vtanh.pop %v1455
  %1477 = vrot.lane.b32.xlu0 %v1430, 32
  %v1478 = vpop.permute.xlu0 %1477
  %v1480 = vmul.f32 %v1474, %v1478
  %1482 = vrot.lane.b32.xlu0 %v1475, 64
  %v1483 = vpop.permute.xlu0 %1482
  %v1485 = vmul.f32 %v1474, %v1483
  %1487 = vrot.lane.b32.xlu0 %v1485, 32
  %v1488 = vpop.permute.xlu0 %1487
  %v1490 = vadd.f32 %v1480, %v1488
  %v1491 = vtanh.pop %v1490
  %1493 = vrot.lane.b32.xlu0 %v1491, 64
  %v1494 = vpop.permute.xlu0 %1493
  %v1496 = vmul.f32 %v1474, %v1494
  %1498 = vrot.lane.b32.xlu0 %v1496, 32
  %v1499 = vpop.permute.xlu0 %1498
  %1501 = vst.msk [vmem:[#allocation2] sm:$0xff] %vm32, %v1499
  %1503 = vrot.lane.b32.xlu0 %v1490, 96
  %v1504 = vpop.permute.xlu0 %1503
  %1506 = vst.msk [vmem:[#allocation3] sm:$0xff] %vm32, %v1504
  %s1507 = scalar_lea.vmem %s5, 56
  %1508 = vst.msk [vmem:[%s1507] sm:$0xff] %vm32, %v1499
  %v1509 = vld [vmem:[#allocation2] sm:$0xff]
  %s1510 = scalar_lea.vmem %s6, 8
  %1511 = vst.msk [vmem:[%s1510] sm:$0xff] %vm32, %v1509
  %v1512 = vld [vmem:[#allocation3] sm:$0xff]
  %s1513 = scalar_lea.vmem %s7, 8
  %1514 = vst.msk [vmem:[%s1513] sm:$0xff] %vm32, %v1512
  // Predicated region
  $region22: #{encoder_forward.1} parent=0 // pred_check
    _
  $region23: #{encoder_forward.1} parent=0 // pred_check_branch
    %1516 = sbr.rel (0) target = $region25
  $region24: #{encoder_forward.1} parent=0 // pred_region
    _
  $region25: #{encoder_forward.1} parent=0 // pred_fallthru
    _
  // Predicated region
  $region26: #{encoder_forward.1} parent=0 // pred_check
    _
  $region27: #{encoder_forward.1} parent=0 // pred_check_branch
    %1518 = sbr.rel (0) target = $region29
  $region28: #{encoder_forward.1} parent=0 // pred_region
    _
  $region29: #{encoder_forward.1} parent=0 // pred_fallthru
    _
  // Predicated region
  $region30: #{encoder_forward.1} parent=0 // pred_check
    _
  $region31: #{encoder_forward.1} parent=0 // pred_check_branch
    %1520 = sbr.rel (0) target = $region33
  $region32: #{encoder_forward.1} parent=0 // pred_region
    _
  $region33: #{encoder_forward.1} parent=0 // pred_fallthru
    _
  // Predicated region
  $region34: #{encoder_forward.1} parent=0 // pred_check
    _
  $region35: #{encoder_forward.1} parent=0 // pred_check_branch
    %1522 = sbr.rel (0) target = $region37
  $region36: #{encoder_forward.1} parent=0 // pred_region
    _
  $region37: #{encoder_forward.1} parent=0 // pred_fallthru
    _
  // Predicated region
  $region38: #{encoder_forward.1} parent=0 // pred_check
    _
  $region39: #{encoder_forward.1} parent=0 // pred_check_branch
    %1524 = sbr.rel (0) target = $region41
  $region40: #{encoder_forward.1} parent=0 // pred_region
    _
  $region41: #{encoder_forward.1} parent=0 // pred_fallthru
    _
  // Predicated region
  $region42: #{encoder_forward.1} parent=0 // pred_check
    _
  $region43: #{encoder_forward.1} parent=0 // pred_check_branch
    %1526 = sbr.rel (0) target = $region45
  $region44: #{encoder_forward.1} parent=0 // pred_region
    _
  $region45: #{encoder_forward.1} parent=0 // pred_fallthru
    _

</llo_original>
